<compile_context>
chip_gen: v5e
topology: v5e:2x2
jax: 0.10.0
libtpu: 0.0.40
codegen_flags: <defaults>
</compile_context>

<pallas_src>
import numpy as np
import jax
import jax.numpy as jnp
from jax.experimental import pallas as pl
from jax.experimental.pallas import tpu as pltpu

# ---- model hyper-parameters (small, consistent with the module) -------------
B = 2            # batch
T = 8            # input_len
D = 6            # dim (pose dimension)
Z = 8            # dim_z
H = 2 * Z        # LSTM hidden size per direction (dim_z * 2) = 16
G = 4 * H        # gate width of one direction = 64
G2 = 2 * G       # fused fwd+rev gate width = 128 (exactly one lane tile)
H2 = 2 * H       # fused fwd+rev state width = 32


# ----------------------------- fused encoder kernel --------------------------
def encoder_kernel(x_ref, len_ref,
                   wlin_ref, blin_ref,
                   wxf_ref, wxr_ref, whh_ref, bg_ref,
                   w1_ref, b1_ref, w2_ref, b2_ref,
                   z_ref):
    x = x_ref[...]                               # (T*B, D) time-major flattened
    lens = len_ref[...]                          # (B, 1) int32
    lens_f = lens.astype(jnp.float32)

    # Linear(D -> Z) + ReLU  (weights pre-transposed to (D, Z))
    xz = jnp.maximum(
        jnp.dot(x, wlin_ref[...], preferred_element_type=jnp.float32)
        + blin_ref[...], 0.0)                    # (T*B, Z)

    # Input-side gate pre-activations for ALL timesteps, both directions, already
    # scattered into the fused 128-wide, per-gate-interleaved column layout.
    # (Hoisted out of the recurrence: two MXU ops total.)
    xgf = jnp.dot(xz, wxf_ref[...], preferred_element_type=jnp.float32) + bg_ref[...]
    xgr = jnp.dot(xz, wxr_ref[...], preferred_element_type=jnp.float32)
    # both: (T*B, 2G)

    whh = whh_ref[...]                           # (2H, 2G) block-structured

    h = jnp.zeros((B, H2), jnp.float32)          # [h_fwd | h_rev]
    c = jnp.zeros((B, H2), jnp.float32)
    acc = jnp.zeros((B, H2), jnp.float32)

    # Fully-unrolled fused fwd+rev recurrence: one (B,2H)@(2H,128) matmul / step.
    for s in range(T):
        tf = s                                   # forward-direction time index
        tr = T - 1 - s                           # reverse-direction time index

        gates = (xgf[tf * B:(tf + 1) * B, :]
                 + xgr[tr * B:(tr + 1) * B, :]
                 + jnp.dot(h, whh, preferred_element_type=jnp.float32))   # (B, 2G)

        i_g = jax.nn.sigmoid(gates[:, 0 * H:2 * H])
        f_g = jax.nn.sigmoid(gates[:, 2 * H:4 * H])
        g_g = jnp.tanh(gates[:, 4 * H:6 * H])
        o_g = jax.nn.sigmoid(gates[:, 6 * H:8 * H])

        c_new = f_g * c + i_g * g_g
        h_new = o_g * jnp.tanh(c_new)

        # packed-sequence masks: fwd half valid iff tf < len, rev half iff tr < len
        m_f = (lens > tf).astype(jnp.float32)    # (B, 1)
        m_r = (lens > tr).astype(jnp.float32)    # (B, 1)
        m = jnp.concatenate([jnp.broadcast_to(m_f, (B, H)),
                             jnp.broadcast_to(m_r, (B, H))], axis=1)      # (B, 2H)

        c = m * c_new + (1.0 - m) * c            # freeze state beyond valid length
        h = m * h_new + (1.0 - m) * h
        acc = acc + m * h_new                    # sum of valid bi-LSTM outputs

    # sum over time / length  (== torch.sum(out, dim=1) / out_lengths)
    out = acc / lens_f                           # (B, 4Z)

    # Linear(4Z -> 2Z) + ReLU, Linear(2Z -> Z)
    h1 = jnp.maximum(
        jnp.dot(out, w1_ref[...], preferred_element_type=jnp.float32)
        + b1_ref[...], 0.0)
    z_ref[...] = (jnp.dot(h1, w2_ref[...], preferred_element_type=jnp.float32)
                  + b2_ref[...])


# ----------------------------- pallas_call wrapper ----------------------------
_VMEM = pl.BlockSpec(memory_space=pltpu.MemorySpace.VMEM)

encoder_call = pl.pallas_call(
    encoder_kernel,
    out_shape=jax.ShapeDtypeStruct((B, Z), jnp.float32),
    in_specs=[_VMEM] * 12,                       # exactly 12 inputs below
    out_specs=_VMEM,
)


@jax.jit
def lstm_encoder_wo_norm(x, x_lengths, params):
    """Forward pass of lstmEncoder_wo_Norm.

    x: (B, T, D) float32 (batch_first), x_lengths: (B,) int.  Returns z: (B, Z).
    """
    x_flat = jnp.transpose(x, (1, 0, 2)).reshape(T * B, D)   # time-major, flattened
    lens = x_lengths.reshape(B, 1).astype(jnp.int32)
    return encoder_call(x_flat, lens, *params)


# ----------------------------- parameter construction -------------------------
def init_linear(key, out_f, in_f, bound=None):
    k1, k2 = jax.random.split(key)
    if bound is None:
        bound = 1.0 / float(in_f) ** 0.5
    w = jax.random.uniform(k1, (out_f, in_f), jnp.float32, -bound, bound)
    b = jax.random.uniform(k2, (out_f,), jnp.float32, -bound, bound)
    return w, b


def fuse_bilstm_weights(wih_f, whh_f, bih_f, bhh_f, wih_r, whh_r, bih_r, bhh_r):
    """Build fused fwd+rev LSTM weights.

    Column layout (width 2G = 128): [i_f i_r | f_f f_r | g_f g_r | o_f o_r],
    each sub-block H wide.  State layout (width 2H): [fwd | rev].
    """
    wxf = jnp.zeros((Z, G2), jnp.float32)        # x -> fwd gate columns
    wxr = jnp.zeros((Z, G2), jnp.float32)        # x -> rev gate columns
    whh = jnp.zeros((H2, G2), jnp.float32)       # [h_f;h_r] -> gates (block-struct)
    bg = jnp.zeros((1, G2), jnp.float32)

    bf = bih_f + bhh_f                           # (G,)
    br = bih_r + bhh_r
    wih_f_t, wih_r_t = wih_f.T, wih_r.T          # (Z, G)
    whh_f_t, whh_r_t = whh_f.T, whh_r.T          # (H, G)

    for k in range(4):                           # PyTorch gate order: i, f, g, o
        fcol = slice(2 * k * H, 2 * k * H + H)
        rcol = slice(2 * k * H + H, 2 * (k + 1) * H)
        src = slice(k * H, (k + 1) * H)
        wxf = wxf.at[:, fcol].set(wih_f_t[:, src])
        wxr = wxr.at[:, rcol].set(wih_r_t[:, src])
        whh = whh.at[0:H, fcol].set(whh_f_t[:, src])
        whh = whh.at[H:H2, rcol].set(whh_r_t[:, src])
        bg = bg.at[0, fcol].set(bf[src])
        bg = bg.at[0, rcol].set(br[src])
    return wxf, wxr, whh, bg


def build_params(key):
    ks = jax.random.split(key, 7)
    lstm_bound = 1.0 / float(H) ** 0.5

    wlin, blin = init_linear(ks[0], Z, D)                    # Linear(dim -> dim_z)
    wih_f, bih_f = init_linear(ks[1], G, Z, lstm_bound)      # LSTM fwd
    whh_f, bhh_f = init_linear(ks[2], G, H, lstm_bound)
    wih_r, bih_r = init_linear(ks[3], G, Z, lstm_bound)      # LSTM reverse
    whh_r, bhh_r = init_linear(ks[4], G, H, lstm_bound)
    w1, b1 = init_linear(ks[5], 2 * Z, 4 * Z)                # Linear(4Z -> 2Z)
    w2, b2 = init_linear(ks[6], Z, 2 * Z)                    # Linear(2Z -> Z)

    wxf, wxr, whh_big, bg = fuse_bilstm_weights(
        wih_f, whh_f, bih_f, bhh_f, wih_r, whh_r, bih_r, bhh_r)

    # all weights pre-transposed to (in_features, out_features); biases as rows
    return (wlin.T, blin.reshape(1, Z),
            wxf, wxr, whh_big, bg,
            w1.T, b1.reshape(1, 2 * Z),
            w2.T, b2.reshape(1, Z))


# ----------------------------- demo / smoke test -------------------------------
if __name__ == "__main__":
    key = jax.random.PRNGKey(0)
    k_x, k_p = jax.random.split(key)

    x = jax.random.normal(k_x, (B, T, D), jnp.float32)
    x_lengths = jnp.array([T, T - 3], jnp.int32)             # variable valid lengths
    params = build_params(k_p)

    z = lstm_encoder_wo_norm(x, x_lengths, params)
    jax.block_until_ready(z)

    assert z.shape == (B, Z)
    assert bool(jnp.all(jnp.isfinite(z)))
    print("KERNEL_OK")
</pallas_src>

<mosaic_0001>
module attributes {stable_mosaic.version = 11 : i64} {
  func.func @encoder_kernel(%arg0: memref<16x6xf32, #tpu.memory_space<vmem>>, %arg1: memref<2x1xi32, #tpu.memory_space<vmem>>, %arg2: memref<6x8xf32, #tpu.memory_space<vmem>>, %arg3: memref<1x8xf32, #tpu.memory_space<vmem>>, %arg4: memref<8x128xf32, #tpu.memory_space<vmem>>, %arg5: memref<8x128xf32, #tpu.memory_space<vmem>>, %arg6: memref<32x128xf32, #tpu.memory_space<vmem>>, %arg7: memref<1x128xf32, #tpu.memory_space<vmem>>, %arg8: memref<32x16xf32, #tpu.memory_space<vmem>>, %arg9: memref<1x16xf32, #tpu.memory_space<vmem>>, %arg10: memref<16x8xf32, #tpu.memory_space<vmem>>, %arg11: memref<1x8xf32, #tpu.memory_space<vmem>>, %arg12: memref<2x8xf32, #tpu.memory_space<vmem>>) attributes {dimension_semantics = [], scalar_prefetch = 0 : i64, scratch_operands = 0 : i64, tpu.core_type = #tpu.core_type<tc>} {
    %c0 = arith.constant 0 : index
    %c0_0 = arith.constant 0 : index
    %0 = vector.load %arg0[%c0, %c0_0] : memref<16x6xf32, #tpu.memory_space<vmem>>, vector<16x6xf32>
    %c0_1 = arith.constant 0 : index
    %c0_2 = arith.constant 0 : index
    %1 = vector.load %arg1[%c0_1, %c0_2] : memref<2x1xi32, #tpu.memory_space<vmem>>, vector<2x1xi32>
    %2 = arith.sitofp %1 : vector<2x1xi32> to vector<2x1xf32>
    %c0_3 = arith.constant 0 : index
    %c0_4 = arith.constant 0 : index
    %3 = vector.load %arg2[%c0_3, %c0_4] : memref<6x8xf32, #tpu.memory_space<vmem>>, vector<6x8xf32>
    %cst = arith.constant dense<0.000000e+00> : vector<16x8xf32>
    %4 = tpu.matmul %0, %3, %cst {dimension_numbers = #tpu.dot_dimension_numbers<[1], [0], [0], [1], [0, 0, 1, 1], [], []>} : vector<16x6xf32>, vector<6x8xf32>, vector<16x8xf32> -> vector<16x8xf32>
    %c0_5 = arith.constant 0 : index
    %c0_6 = arith.constant 0 : index
    %5 = vector.load %arg3[%c0_5, %c0_6] : memref<1x8xf32, #tpu.memory_space<vmem>>, vector<1x8xf32>
    %6 = vector.broadcast %5 : vector<1x8xf32> to vector<16x8xf32>
    %7 = arith.addf %4, %6 : vector<16x8xf32>
    %cst_7 = arith.constant 0.000000e+00 : f32
    %8 = vector.broadcast %cst_7 : f32 to vector<16x8xf32>
    %9 = arith.maximumf %7, %8 : vector<16x8xf32>
    %c0_8 = arith.constant 0 : index
    %c0_9 = arith.constant 0 : index
    %10 = vector.load %arg4[%c0_8, %c0_9] : memref<8x128xf32, #tpu.memory_space<vmem>>, vector<8x128xf32>
    %cst_10 = arith.constant dense<0.000000e+00> : vector<16x128xf32>
    %11 = tpu.matmul %9, %10, %cst_10 {dimension_numbers = #tpu.dot_dimension_numbers<[1], [0], [0], [1], [0, 0, 1, 1], [], []>} : vector<16x8xf32>, vector<8x128xf32>, vector<16x128xf32> -> vector<16x128xf32>
    %c0_11 = arith.constant 0 : index
    %c0_12 = arith.constant 0 : index
    %12 = vector.load %arg7[%c0_11, %c0_12] : memref<1x128xf32, #tpu.memory_space<vmem>>, vector<1x128xf32>
    %13 = vector.broadcast %12 : vector<1x128xf32> to vector<16x128xf32>
    %14 = arith.addf %11, %13 : vector<16x128xf32>
    %c0_13 = arith.constant 0 : index
    %c0_14 = arith.constant 0 : index
    %15 = vector.load %arg5[%c0_13, %c0_14] : memref<8x128xf32, #tpu.memory_space<vmem>>, vector<8x128xf32>
    %cst_15 = arith.constant dense<0.000000e+00> : vector<16x128xf32>
    %16 = tpu.matmul %9, %15, %cst_15 {dimension_numbers = #tpu.dot_dimension_numbers<[1], [0], [0], [1], [0, 0, 1, 1], [], []>} : vector<16x8xf32>, vector<8x128xf32>, vector<16x128xf32> -> vector<16x128xf32>
    %c0_16 = arith.constant 0 : index
    %c0_17 = arith.constant 0 : index
    %17 = vector.load %arg6[%c0_16, %c0_17] : memref<32x128xf32, #tpu.memory_space<vmem>>, vector<32x128xf32>
    %cst_18 = arith.constant 0.000000e+00 : f32
    %18 = vector.broadcast %cst_18 : f32 to vector<2x32xf32>
    %cst_19 = arith.constant 0.000000e+00 : f32
    %19 = vector.broadcast %cst_19 : f32 to vector<2x32xf32>
    %cst_20 = arith.constant 0.000000e+00 : f32
    %20 = vector.broadcast %cst_20 : f32 to vector<2x32xf32>
    %21 = vector.extract_strided_slice %14 {offsets = [0, 0], sizes = [2, 128], strides = [1, 1]} : vector<16x128xf32> to vector<2x128xf32>
    %22 = vector.extract_strided_slice %16 {offsets = [14, 0], sizes = [2, 128], strides = [1, 1]} : vector<16x128xf32> to vector<2x128xf32>
    %23 = arith.addf %21, %22 : vector<2x128xf32>
    %cst_21 = arith.constant dense<0.000000e+00> : vector<2x128xf32>
    %24 = tpu.matmul %18, %17, %cst_21 {dimension_numbers = #tpu.dot_dimension_numbers<[1], [0], [0], [1], [0, 0, 1, 1], [], []>} : vector<2x32xf32>, vector<32x128xf32>, vector<2x128xf32> -> vector<2x128xf32>
    %25 = arith.addf %23, %24 : vector<2x128xf32>
    %26 = vector.extract_strided_slice %25 {offsets = [0, 0], sizes = [2, 32], strides = [1, 1]} : vector<2x128xf32> to vector<2x32xf32>
    %27 = arith.negf %26 : vector<2x32xf32>
    %28 = math.exp %27 : vector<2x32xf32>
    %cst_22 = arith.constant 1.000000e+00 : f32
    %29 = vector.broadcast %cst_22 : f32 to vector<2x32xf32>
    %30 = arith.addf %29, %28 : vector<2x32xf32>
    %31 = arith.divf %29, %30 : vector<2x32xf32>
    %32 = vector.extract_strided_slice %25 {offsets = [0, 32], sizes = [2, 32], strides = [1, 1]} : vector<2x128xf32> to vector<2x32xf32>
    %33 = arith.negf %32 : vector<2x32xf32>
    %34 = math.exp %33 : vector<2x32xf32>
    %cst_23 = arith.constant 1.000000e+00 : f32
    %35 = vector.broadcast %cst_23 : f32 to vector<2x32xf32>
    %36 = arith.addf %35, %34 : vector<2x32xf32>
    %37 = arith.divf %35, %36 : vector<2x32xf32>
    %38 = vector.extract_strided_slice %25 {offsets = [0, 64], sizes = [2, 32], strides = [1, 1]} : vector<2x128xf32> to vector<2x32xf32>
    %39 = math.tanh %38 : vector<2x32xf32>
    %40 = vector.extract_strided_slice %25 {offsets = [0, 96], sizes = [2, 32], strides = [1, 1]} : vector<2x128xf32> to vector<2x32xf32>
    %41 = arith.negf %40 : vector<2x32xf32>
    %42 = math.exp %41 : vector<2x32xf32>
    %cst_24 = arith.constant 1.000000e+00 : f32
    %43 = vector.broadcast %cst_24 : f32 to vector<2x32xf32>
    %44 = arith.addf %43, %42 : vector<2x32xf32>
    %45 = arith.divf %43, %44 : vector<2x32xf32>
    %46 = arith.mulf %37, %19 : vector<2x32xf32>
    %47 = arith.mulf %31, %39 : vector<2x32xf32>
    %48 = arith.addf %46, %47 : vector<2x32xf32>
    %49 = math.tanh %48 : vector<2x32xf32>
    %50 = arith.mulf %45, %49 : vector<2x32xf32>
    %c0_i32 = arith.constant 0 : i32
    %51 = vector.broadcast %c0_i32 : i32 to vector<2x1xi32>
    %52 = arith.cmpi sgt, %1, %51 : vector<2x1xi32>
    %53 = arith.extui %52 : vector<2x1xi1> to vector<2x1xi32>
    %54 = arith.sitofp %53 : vector<2x1xi32> to vector<2x1xf32>
    %c7_i32 = arith.constant 7 : i32
    %55 = vector.broadcast %c7_i32 : i32 to vector<2x1xi32>
    %56 = arith.cmpi sgt, %1, %55 : vector<2x1xi32>
    %57 = arith.extui %56 : vector<2x1xi1> to vector<2x1xi32>
    %58 = arith.sitofp %57 : vector<2x1xi32> to vector<2x1xf32>
    %59 = vector.shape_cast %54 : vector<2x1xf32> to vector<2x1xf32>
    %60 = vector.broadcast %59 : vector<2x1xf32> to vector<2x16xf32>
    %61 = vector.shape_cast %58 : vector<2x1xf32> to vector<2x1xf32>
    %62 = vector.broadcast %61 : vector<2x1xf32> to vector<2x16xf32>
    %63 = tpu.concatenate %60, %62 in 1 : vector<2x16xf32>, vector<2x16xf32> -> vector<2x32xf32>
    %64 = arith.mulf %63, %48 : vector<2x32xf32>
    %cst_25 = arith.constant 1.000000e+00 : f32
    %65 = vector.broadcast %cst_25 : f32 to vector<2x32xf32>
    %66 = arith.subf %65, %63 : vector<2x32xf32>
    %67 = arith.mulf %66, %19 : vector<2x32xf32>
    %68 = arith.addf %64, %67 : vector<2x32xf32>
    %69 = arith.mulf %63, %50 : vector<2x32xf32>
    %cst_26 = arith.constant 1.000000e+00 : f32
    %70 = vector.broadcast %cst_26 : f32 to vector<2x32xf32>
    %71 = arith.subf %70, %63 : vector<2x32xf32>
    %72 = arith.mulf %71, %18 : vector<2x32xf32>
    %73 = arith.addf %69, %72 : vector<2x32xf32>
    %74 = arith.mulf %63, %50 : vector<2x32xf32>
    %75 = arith.addf %20, %74 : vector<2x32xf32>
    %76 = vector.extract_strided_slice %14 {offsets = [2, 0], sizes = [2, 128], strides = [1, 1]} : vector<16x128xf32> to vector<2x128xf32>
    %77 = vector.extract_strided_slice %16 {offsets = [12, 0], sizes = [2, 128], strides = [1, 1]} : vector<16x128xf32> to vector<2x128xf32>
    %78 = arith.addf %76, %77 : vector<2x128xf32>
    %cst_27 = arith.constant dense<0.000000e+00> : vector<2x128xf32>
    %79 = tpu.matmul %73, %17, %cst_27 {dimension_numbers = #tpu.dot_dimension_numbers<[1], [0], [0], [1], [0, 0, 1, 1], [], []>} : vector<2x32xf32>, vector<32x128xf32>, vector<2x128xf32> -> vector<2x128xf32>
    %80 = arith.addf %78, %79 : vector<2x128xf32>
    %81 = vector.extract_strided_slice %80 {offsets = [0, 0], sizes = [2, 32], strides = [1, 1]} : vector<2x128xf32> to vector<2x32xf32>
    %82 = arith.negf %81 : vector<2x32xf32>
    %83 = math.exp %82 : vector<2x32xf32>
    %cst_28 = arith.constant 1.000000e+00 : f32
    %84 = vector.broadcast %cst_28 : f32 to vector<2x32xf32>
    %85 = arith.addf %84, %83 : vector<2x32xf32>
    %86 = arith.divf %84, %85 : vector<2x32xf32>
    %87 = vector.extract_strided_slice %80 {offsets = [0, 32], sizes = [2, 32], strides = [1, 1]} : vector<2x128xf32> to vector<2x32xf32>
    %88 = arith.negf %87 : vector<2x32xf32>
    %89 = math.exp %88 : vector<2x32xf32>
    %cst_29 = arith.constant 1.000000e+00 : f32
    %90 = vector.broadcast %cst_29 : f32 to vector<2x32xf32>
    %91 = arith.addf %90, %89 : vector<2x32xf32>
    %92 = arith.divf %90, %91 : vector<2x32xf32>
    %93 = vector.extract_strided_slice %80 {offsets = [0, 64], sizes = [2, 32], strides = [1, 1]} : vector<2x128xf32> to vector<2x32xf32>
    %94 = math.tanh %93 : vector<2x32xf32>
    %95 = vector.extract_strided_slice %80 {offsets = [0, 96], sizes = [2, 32], strides = [1, 1]} : vector<2x128xf32> to vector<2x32xf32>
    %96 = arith.negf %95 : vector<2x32xf32>
    %97 = math.exp %96 : vector<2x32xf32>
    %cst_30 = arith.constant 1.000000e+00 : f32
    %98 = vector.broadcast %cst_30 : f32 to vector<2x32xf32>
    %99 = arith.addf %98, %97 : vector<2x32xf32>
    %100 = arith.divf %98, %99 : vector<2x32xf32>
    %101 = arith.mulf %92, %68 : vector<2x32xf32>
    %102 = arith.mulf %86, %94 : vector<2x32xf32>
    %103 = arith.addf %101, %102 : vector<2x32xf32>
    %104 = math.tanh %103 : vector<2x32xf32>
    %105 = arith.mulf %100, %104 : vector<2x32xf32>
    %c1_i32 = arith.constant 1 : i32
    %106 = vector.broadcast %c1_i32 : i32 to vector<2x1xi32>
    %107 = arith.cmpi sgt, %1, %106 : vector<2x1xi32>
    %108 = arith.extui %107 : vector<2x1xi1> to vector<2x1xi32>
    %109 = arith.sitofp %108 : vector<2x1xi32> to vector<2x1xf32>
    %c6_i32 = arith.constant 6 : i32
    %110 = vector.broadcast %c6_i32 : i32 to vector<2x1xi32>
    %111 = arith.cmpi sgt, %1, %110 : vector<2x1xi32>
    %112 = arith.extui %111 : vector<2x1xi1> to vector<2x1xi32>
    %113 = arith.sitofp %112 : vector<2x1xi32> to vector<2x1xf32>
    %114 = vector.shape_cast %109 : vector<2x1xf32> to vector<2x1xf32>
    %115 = vector.broadcast %114 : vector<2x1xf32> to vector<2x16xf32>
    %116 = vector.shape_cast %113 : vector<2x1xf32> to vector<2x1xf32>
    %117 = vector.broadcast %116 : vector<2x1xf32> to vector<2x16xf32>
    %118 = tpu.concatenate %115, %117 in 1 : vector<2x16xf32>, vector<2x16xf32> -> vector<2x32xf32>
    %119 = arith.mulf %118, %103 : vector<2x32xf32>
    %cst_31 = arith.constant 1.000000e+00 : f32
    %120 = vector.broadcast %cst_31 : f32 to vector<2x32xf32>
    %121 = arith.subf %120, %118 : vector<2x32xf32>
    %122 = arith.mulf %121, %68 : vector<2x32xf32>
    %123 = arith.addf %119, %122 : vector<2x32xf32>
    %124 = arith.mulf %118, %105 : vector<2x32xf32>
    %cst_32 = arith.constant 1.000000e+00 : f32
    %125 = vector.broadcast %cst_32 : f32 to vector<2x32xf32>
    %126 = arith.subf %125, %118 : vector<2x32xf32>
    %127 = arith.mulf %126, %73 : vector<2x32xf32>
    %128 = arith.addf %124, %127 : vector<2x32xf32>
    %129 = arith.mulf %118, %105 : vector<2x32xf32>
    %130 = arith.addf %75, %129 : vector<2x32xf32>
    %131 = vector.extract_strided_slice %14 {offsets = [4, 0], sizes = [2, 128], strides = [1, 1]} : vector<16x128xf32> to vector<2x128xf32>
    %132 = vector.extract_strided_slice %16 {offsets = [10, 0], sizes = [2, 128], strides = [1, 1]} : vector<16x128xf32> to vector<2x128xf32>
    %133 = arith.addf %131, %132 : vector<2x128xf32>
    %cst_33 = arith.constant dense<0.000000e+00> : vector<2x128xf32>
    %134 = tpu.matmul %128, %17, %cst_33 {dimension_numbers = #tpu.dot_dimension_numbers<[1], [0], [0], [1], [0, 0, 1, 1], [], []>} : vector<2x32xf32>, vector<32x128xf32>, vector<2x128xf32> -> vector<2x128xf32>
    %135 = arith.addf %133, %134 : vector<2x128xf32>
    %136 = vector.extract_strided_slice %135 {offsets = [0, 0], sizes = [2, 32], strides = [1, 1]} : vector<2x128xf32> to vector<2x32xf32>
    %137 = arith.negf %136 : vector<2x32xf32>
    %138 = math.exp %137 : vector<2x32xf32>
    %cst_34 = arith.constant 1.000000e+00 : f32
    %139 = vector.broadcast %cst_34 : f32 to vector<2x32xf32>
    %140 = arith.addf %139, %138 : vector<2x32xf32>
    %141 = arith.divf %139, %140 : vector<2x32xf32>
    %142 = vector.extract_strided_slice %135 {offsets = [0, 32], sizes = [2, 32], strides = [1, 1]} : vector<2x128xf32> to vector<2x32xf32>
    %143 = arith.negf %142 : vector<2x32xf32>
    %144 = math.exp %143 : vector<2x32xf32>
    %cst_35 = arith.constant 1.000000e+00 : f32
    %145 = vector.broadcast %cst_35 : f32 to vector<2x32xf32>
    %146 = arith.addf %145, %144 : vector<2x32xf32>
    %147 = arith.divf %145, %146 : vector<2x32xf32>
    %148 = vector.extract_strided_slice %135 {offsets = [0, 64], sizes = [2, 32], strides = [1, 1]} : vector<2x128xf32> to vector<2x32xf32>
    %149 = math.tanh %148 : vector<2x32xf32>
    %150 = vector.extract_strided_slice %135 {offsets = [0, 96], sizes = [2, 32], strides = [1, 1]} : vector<2x128xf32> to vector<2x32xf32>
    %151 = arith.negf %150 : vector<2x32xf32>
    %152 = math.exp %151 : vector<2x32xf32>
    %cst_36 = arith.constant 1.000000e+00 : f32
    %153 = vector.broadcast %cst_36 : f32 to vector<2x32xf32>
    %154 = arith.addf %153, %152 : vector<2x32xf32>
    %155 = arith.divf %153, %154 : vector<2x32xf32>
    %156 = arith.mulf %147, %123 : vector<2x32xf32>
    %157 = arith.mulf %141, %149 : vector<2x32xf32>
    %158 = arith.addf %156, %157 : vector<2x32xf32>
    %159 = math.tanh %158 : vector<2x32xf32>
    %160 = arith.mulf %155, %159 : vector<2x32xf32>
    %c2_i32 = arith.constant 2 : i32
    %161 = vector.broadcast %c2_i32 : i32 to vector<2x1xi32>
    %162 = arith.cmpi sgt, %1, %161 : vector<2x1xi32>
    %163 = arith.extui %162 : vector<2x1xi1> to vector<2x1xi32>
    %164 = arith.sitofp %163 : vector<2x1xi32> to vector<2x1xf32>
    %c5_i32 = arith.constant 5 : i32
    %165 = vector.broadcast %c5_i32 : i32 to vector<2x1xi32>
    %166 = arith.cmpi sgt, %1, %165 : vector<2x1xi32>
    %167 = arith.extui %166 : vector<2x1xi1> to vector<2x1xi32>
    %168 = arith.sitofp %167 : vector<2x1xi32> to vector<2x1xf32>
    %169 = vector.shape_cast %164 : vector<2x1xf32> to vector<2x1xf32>
    %170 = vector.broadcast %169 : vector<2x1xf32> to vector<2x16xf32>
    %171 = vector.shape_cast %168 : vector<2x1xf32> to vector<2x1xf32>
    %172 = vector.broadcast %171 : vector<2x1xf32> to vector<2x16xf32>
    %173 = tpu.concatenate %170, %172 in 1 : vector<2x16xf32>, vector<2x16xf32> -> vector<2x32xf32>
    %174 = arith.mulf %173, %158 : vector<2x32xf32>
    %cst_37 = arith.constant 1.000000e+00 : f32
    %175 = vector.broadcast %cst_37 : f32 to vector<2x32xf32>
    %176 = arith.subf %175, %173 : vector<2x32xf32>
    %177 = arith.mulf %176, %123 : vector<2x32xf32>
    %178 = arith.addf %174, %177 : vector<2x32xf32>
    %179 = arith.mulf %173, %160 : vector<2x32xf32>
    %cst_38 = arith.constant 1.000000e+00 : f32
    %180 = vector.broadcast %cst_38 : f32 to vector<2x32xf32>
    %181 = arith.subf %180, %173 : vector<2x32xf32>
    %182 = arith.mulf %181, %128 : vector<2x32xf32>
    %183 = arith.addf %179, %182 : vector<2x32xf32>
    %184 = arith.mulf %173, %160 : vector<2x32xf32>
    %185 = arith.addf %130, %184 : vector<2x32xf32>
    %186 = vector.extract_strided_slice %14 {offsets = [6, 0], sizes = [2, 128], strides = [1, 1]} : vector<16x128xf32> to vector<2x128xf32>
    %187 = vector.extract_strided_slice %16 {offsets = [8, 0], sizes = [2, 128], strides = [1, 1]} : vector<16x128xf32> to vector<2x128xf32>
    %188 = arith.addf %186, %187 : vector<2x128xf32>
    %cst_39 = arith.constant dense<0.000000e+00> : vector<2x128xf32>
    %189 = tpu.matmul %183, %17, %cst_39 {dimension_numbers = #tpu.dot_dimension_numbers<[1], [0], [0], [1], [0, 0, 1, 1], [], []>} : vector<2x32xf32>, vector<32x128xf32>, vector<2x128xf32> -> vector<2x128xf32>
    %190 = arith.addf %188, %189 : vector<2x128xf32>
    %191 = vector.extract_strided_slice %190 {offsets = [0, 0], sizes = [2, 32], strides = [1, 1]} : vector<2x128xf32> to vector<2x32xf32>
    %192 = arith.negf %191 : vector<2x32xf32>
    %193 = math.exp %192 : vector<2x32xf32>
    %cst_40 = arith.constant 1.000000e+00 : f32
    %194 = vector.broadcast %cst_40 : f32 to vector<2x32xf32>
    %195 = arith.addf %194, %193 : vector<2x32xf32>
    %196 = arith.divf %194, %195 : vector<2x32xf32>
    %197 = vector.extract_strided_slice %190 {offsets = [0, 32], sizes = [2, 32], strides = [1, 1]} : vector<2x128xf32> to vector<2x32xf32>
    %198 = arith.negf %197 : vector<2x32xf32>
    %199 = math.exp %198 : vector<2x32xf32>
    %cst_41 = arith.constant 1.000000e+00 : f32
    %200 = vector.broadcast %cst_41 : f32 to vector<2x32xf32>
    %201 = arith.addf %200, %199 : vector<2x32xf32>
    %202 = arith.divf %200, %201 : vector<2x32xf32>
    %203 = vector.extract_strided_slice %190 {offsets = [0, 64], sizes = [2, 32], strides = [1, 1]} : vector<2x128xf32> to vector<2x32xf32>
    %204 = math.tanh %203 : vector<2x32xf32>
    %205 = vector.extract_strided_slice %190 {offsets = [0, 96], sizes = [2, 32], strides = [1, 1]} : vector<2x128xf32> to vector<2x32xf32>
    %206 = arith.negf %205 : vector<2x32xf32>
    %207 = math.exp %206 : vector<2x32xf32>
    %cst_42 = arith.constant 1.000000e+00 : f32
    %208 = vector.broadcast %cst_42 : f32 to vector<2x32xf32>
    %209 = arith.addf %208, %207 : vector<2x32xf32>
    %210 = arith.divf %208, %209 : vector<2x32xf32>
    %211 = arith.mulf %202, %178 : vector<2x32xf32>
    %212 = arith.mulf %196, %204 : vector<2x32xf32>
    %213 = arith.addf %211, %212 : vector<2x32xf32>
    %214 = math.tanh %213 : vector<2x32xf32>
    %215 = arith.mulf %210, %214 : vector<2x32xf32>
    %c3_i32 = arith.constant 3 : i32
    %216 = vector.broadcast %c3_i32 : i32 to vector<2x1xi32>
    %217 = arith.cmpi sgt, %1, %216 : vector<2x1xi32>
    %218 = arith.extui %217 : vector<2x1xi1> to vector<2x1xi32>
    %219 = arith.sitofp %218 : vector<2x1xi32> to vector<2x1xf32>
    %c4_i32 = arith.constant 4 : i32
    %220 = vector.broadcast %c4_i32 : i32 to vector<2x1xi32>
    %221 = arith.cmpi sgt, %1, %220 : vector<2x1xi32>
    %222 = arith.extui %221 : vector<2x1xi1> to vector<2x1xi32>
    %223 = arith.sitofp %222 : vector<2x1xi32> to vector<2x1xf32>
    %224 = vector.shape_cast %219 : vector<2x1xf32> to vector<2x1xf32>
    %225 = vector.broadcast %224 : vector<2x1xf32> to vector<2x16xf32>
    %226 = vector.shape_cast %223 : vector<2x1xf32> to vector<2x1xf32>
    %227 = vector.broadcast %226 : vector<2x1xf32> to vector<2x16xf32>
    %228 = tpu.concatenate %225, %227 in 1 : vector<2x16xf32>, vector<2x16xf32> -> vector<2x32xf32>
    %229 = arith.mulf %228, %213 : vector<2x32xf32>
    %cst_43 = arith.constant 1.000000e+00 : f32
    %230 = vector.broadcast %cst_43 : f32 to vector<2x32xf32>
    %231 = arith.subf %230, %228 : vector<2x32xf32>
    %232 = arith.mulf %231, %178 : vector<2x32xf32>
    %233 = arith.addf %229, %232 : vector<2x32xf32>
    %234 = arith.mulf %228, %215 : vector<2x32xf32>
    %cst_44 = arith.constant 1.000000e+00 : f32
    %235 = vector.broadcast %cst_44 : f32 to vector<2x32xf32>
    %236 = arith.subf %235, %228 : vector<2x32xf32>
    %237 = arith.mulf %236, %183 : vector<2x32xf32>
    %238 = arith.addf %234, %237 : vector<2x32xf32>
    %239 = arith.mulf %228, %215 : vector<2x32xf32>
    %240 = arith.addf %185, %239 : vector<2x32xf32>
    %241 = vector.extract_strided_slice %14 {offsets = [8, 0], sizes = [2, 128], strides = [1, 1]} : vector<16x128xf32> to vector<2x128xf32>
    %242 = vector.extract_strided_slice %16 {offsets = [6, 0], sizes = [2, 128], strides = [1, 1]} : vector<16x128xf32> to vector<2x128xf32>
    %243 = arith.addf %241, %242 : vector<2x128xf32>
    %cst_45 = arith.constant dense<0.000000e+00> : vector<2x128xf32>
    %244 = tpu.matmul %238, %17, %cst_45 {dimension_numbers = #tpu.dot_dimension_numbers<[1], [0], [0], [1], [0, 0, 1, 1], [], []>} : vector<2x32xf32>, vector<32x128xf32>, vector<2x128xf32> -> vector<2x128xf32>
    %245 = arith.addf %243, %244 : vector<2x128xf32>
    %246 = vector.extract_strided_slice %245 {offsets = [0, 0], sizes = [2, 32], strides = [1, 1]} : vector<2x128xf32> to vector<2x32xf32>
    %247 = arith.negf %246 : vector<2x32xf32>
    %248 = math.exp %247 : vector<2x32xf32>
    %cst_46 = arith.constant 1.000000e+00 : f32
    %249 = vector.broadcast %cst_46 : f32 to vector<2x32xf32>
    %250 = arith.addf %249, %248 : vector<2x32xf32>
    %251 = arith.divf %249, %250 : vector<2x32xf32>
    %252 = vector.extract_strided_slice %245 {offsets = [0, 32], sizes = [2, 32], strides = [1, 1]} : vector<2x128xf32> to vector<2x32xf32>
    %253 = arith.negf %252 : vector<2x32xf32>
    %254 = math.exp %253 : vector<2x32xf32>
    %cst_47 = arith.constant 1.000000e+00 : f32
    %255 = vector.broadcast %cst_47 : f32 to vector<2x32xf32>
    %256 = arith.addf %255, %254 : vector<2x32xf32>
    %257 = arith.divf %255, %256 : vector<2x32xf32>
    %258 = vector.extract_strided_slice %245 {offsets = [0, 64], sizes = [2, 32], strides = [1, 1]} : vector<2x128xf32> to vector<2x32xf32>
    %259 = math.tanh %258 : vector<2x32xf32>
    %260 = vector.extract_strided_slice %245 {offsets = [0, 96], sizes = [2, 32], strides = [1, 1]} : vector<2x128xf32> to vector<2x32xf32>
    %261 = arith.negf %260 : vector<2x32xf32>
    %262 = math.exp %261 : vector<2x32xf32>
    %cst_48 = arith.constant 1.000000e+00 : f32
    %263 = vector.broadcast %cst_48 : f32 to vector<2x32xf32>
    %264 = arith.addf %263, %262 : vector<2x32xf32>
    %265 = arith.divf %263, %264 : vector<2x32xf32>
    %266 = arith.mulf %257, %233 : vector<2x32xf32>
    %267 = arith.mulf %251, %259 : vector<2x32xf32>
    %268 = arith.addf %266, %267 : vector<2x32xf32>
    %269 = math.tanh %268 : vector<2x32xf32>
    %270 = arith.mulf %265, %269 : vector<2x32xf32>
    %c4_i32_49 = arith.constant 4 : i32
    %271 = vector.broadcast %c4_i32_49 : i32 to vector<2x1xi32>
    %272 = arith.cmpi sgt, %1, %271 : vector<2x1xi32>
    %273 = arith.extui %272 : vector<2x1xi1> to vector<2x1xi32>
    %274 = arith.sitofp %273 : vector<2x1xi32> to vector<2x1xf32>
    %c3_i32_50 = arith.constant 3 : i32
    %275 = vector.broadcast %c3_i32_50 : i32 to vector<2x1xi32>
    %276 = arith.cmpi sgt, %1, %275 : vector<2x1xi32>
    %277 = arith.extui %276 : vector<2x1xi1> to vector<2x1xi32>
    %278 = arith.sitofp %277 : vector<2x1xi32> to vector<2x1xf32>
    %279 = vector.shape_cast %274 : vector<2x1xf32> to vector<2x1xf32>
    %280 = vector.broadcast %279 : vector<2x1xf32> to vector<2x16xf32>
    %281 = vector.shape_cast %278 : vector<2x1xf32> to vector<2x1xf32>
    %282 = vector.broadcast %281 : vector<2x1xf32> to vector<2x16xf32>
    %283 = tpu.concatenate %280, %282 in 1 : vector<2x16xf32>, vector<2x16xf32> -> vector<2x32xf32>
    %284 = arith.mulf %283, %268 : vector<2x32xf32>
    %cst_51 = arith.constant 1.000000e+00 : f32
    %285 = vector.broadcast %cst_51 : f32 to vector<2x32xf32>
    %286 = arith.subf %285, %283 : vector<2x32xf32>
    %287 = arith.mulf %286, %233 : vector<2x32xf32>
    %288 = arith.addf %284, %287 : vector<2x32xf32>
    %289 = arith.mulf %283, %270 : vector<2x32xf32>
    %cst_52 = arith.constant 1.000000e+00 : f32
    %290 = vector.broadcast %cst_52 : f32 to vector<2x32xf32>
    %291 = arith.subf %290, %283 : vector<2x32xf32>
    %292 = arith.mulf %291, %238 : vector<2x32xf32>
    %293 = arith.addf %289, %292 : vector<2x32xf32>
    %294 = arith.mulf %283, %270 : vector<2x32xf32>
    %295 = arith.addf %240, %294 : vector<2x32xf32>
    %296 = vector.extract_strided_slice %14 {offsets = [10, 0], sizes = [2, 128], strides = [1, 1]} : vector<16x128xf32> to vector<2x128xf32>
    %297 = vector.extract_strided_slice %16 {offsets = [4, 0], sizes = [2, 128], strides = [1, 1]} : vector<16x128xf32> to vector<2x128xf32>
    %298 = arith.addf %296, %297 : vector<2x128xf32>
    %cst_53 = arith.constant dense<0.000000e+00> : vector<2x128xf32>
    %299 = tpu.matmul %293, %17, %cst_53 {dimension_numbers = #tpu.dot_dimension_numbers<[1], [0], [0], [1], [0, 0, 1, 1], [], []>} : vector<2x32xf32>, vector<32x128xf32>, vector<2x128xf32> -> vector<2x128xf32>
    %300 = arith.addf %298, %299 : vector<2x128xf32>
    %301 = vector.extract_strided_slice %300 {offsets = [0, 0], sizes = [2, 32], strides = [1, 1]} : vector<2x128xf32> to vector<2x32xf32>
    %302 = arith.negf %301 : vector<2x32xf32>
    %303 = math.exp %302 : vector<2x32xf32>
    %cst_54 = arith.constant 1.000000e+00 : f32
    %304 = vector.broadcast %cst_54 : f32 to vector<2x32xf32>
    %305 = arith.addf %304, %303 : vector<2x32xf32>
    %306 = arith.divf %304, %305 : vector<2x32xf32>
    %307 = vector.extract_strided_slice %300 {offsets = [0, 32], sizes = [2, 32], strides = [1, 1]} : vector<2x128xf32> to vector<2x32xf32>
    %308 = arith.negf %307 : vector<2x32xf32>
    %309 = math.exp %308 : vector<2x32xf32>
    %cst_55 = arith.constant 1.000000e+00 : f32
    %310 = vector.broadcast %cst_55 : f32 to vector<2x32xf32>
    %311 = arith.addf %310, %309 : vector<2x32xf32>
    %312 = arith.divf %310, %311 : vector<2x32xf32>
    %313 = vector.extract_strided_slice %300 {offsets = [0, 64], sizes = [2, 32], strides = [1, 1]} : vector<2x128xf32> to vector<2x32xf32>
    %314 = math.tanh %313 : vector<2x32xf32>
    %315 = vector.extract_strided_slice %300 {offsets = [0, 96], sizes = [2, 32], strides = [1, 1]} : vector<2x128xf32> to vector<2x32xf32>
    %316 = arith.negf %315 : vector<2x32xf32>
    %317 = math.exp %316 : vector<2x32xf32>
    %cst_56 = arith.constant 1.000000e+00 : f32
    %318 = vector.broadcast %cst_56 : f32 to vector<2x32xf32>
    %319 = arith.addf %318, %317 : vector<2x32xf32>
    %320 = arith.divf %318, %319 : vector<2x32xf32>
    %321 = arith.mulf %312, %288 : vector<2x32xf32>
    %322 = arith.mulf %306, %314 : vector<2x32xf32>
    %323 = arith.addf %321, %322 : vector<2x32xf32>
    %324 = math.tanh %323 : vector<2x32xf32>
    %325 = arith.mulf %320, %324 : vector<2x32xf32>
    %c5_i32_57 = arith.constant 5 : i32
    %326 = vector.broadcast %c5_i32_57 : i32 to vector<2x1xi32>
    %327 = arith.cmpi sgt, %1, %326 : vector<2x1xi32>
    %328 = arith.extui %327 : vector<2x1xi1> to vector<2x1xi32>
    %329 = arith.sitofp %328 : vector<2x1xi32> to vector<2x1xf32>
    %c2_i32_58 = arith.constant 2 : i32
    %330 = vector.broadcast %c2_i32_58 : i32 to vector<2x1xi32>
    %331 = arith.cmpi sgt, %1, %330 : vector<2x1xi32>
    %332 = arith.extui %331 : vector<2x1xi1> to vector<2x1xi32>
    %333 = arith.sitofp %332 : vector<2x1xi32> to vector<2x1xf32>
    %334 = vector.shape_cast %329 : vector<2x1xf32> to vector<2x1xf32>
    %335 = vector.broadcast %334 : vector<2x1xf32> to vector<2x16xf32>
    %336 = vector.shape_cast %333 : vector<2x1xf32> to vector<2x1xf32>
    %337 = vector.broadcast %336 : vector<2x1xf32> to vector<2x16xf32>
    %338 = tpu.concatenate %335, %337 in 1 : vector<2x16xf32>, vector<2x16xf32> -> vector<2x32xf32>
    %339 = arith.mulf %338, %323 : vector<2x32xf32>
    %cst_59 = arith.constant 1.000000e+00 : f32
    %340 = vector.broadcast %cst_59 : f32 to vector<2x32xf32>
    %341 = arith.subf %340, %338 : vector<2x32xf32>
    %342 = arith.mulf %341, %288 : vector<2x32xf32>
    %343 = arith.addf %339, %342 : vector<2x32xf32>
    %344 = arith.mulf %338, %325 : vector<2x32xf32>
    %cst_60 = arith.constant 1.000000e+00 : f32
    %345 = vector.broadcast %cst_60 : f32 to vector<2x32xf32>
    %346 = arith.subf %345, %338 : vector<2x32xf32>
    %347 = arith.mulf %346, %293 : vector<2x32xf32>
    %348 = arith.addf %344, %347 : vector<2x32xf32>
    %349 = arith.mulf %338, %325 : vector<2x32xf32>
    %350 = arith.addf %295, %349 : vector<2x32xf32>
    %351 = vector.extract_strided_slice %14 {offsets = [12, 0], sizes = [2, 128], strides = [1, 1]} : vector<16x128xf32> to vector<2x128xf32>
    %352 = vector.extract_strided_slice %16 {offsets = [2, 0], sizes = [2, 128], strides = [1, 1]} : vector<16x128xf32> to vector<2x128xf32>
    %353 = arith.addf %351, %352 : vector<2x128xf32>
    %cst_61 = arith.constant dense<0.000000e+00> : vector<2x128xf32>
    %354 = tpu.matmul %348, %17, %cst_61 {dimension_numbers = #tpu.dot_dimension_numbers<[1], [0], [0], [1], [0, 0, 1, 1], [], []>} : vector<2x32xf32>, vector<32x128xf32>, vector<2x128xf32> -> vector<2x128xf32>
    %355 = arith.addf %353, %354 : vector<2x128xf32>
    %356 = vector.extract_strided_slice %355 {offsets = [0, 0], sizes = [2, 32], strides = [1, 1]} : vector<2x128xf32> to vector<2x32xf32>
    %357 = arith.negf %356 : vector<2x32xf32>
    %358 = math.exp %357 : vector<2x32xf32>
    %cst_62 = arith.constant 1.000000e+00 : f32
    %359 = vector.broadcast %cst_62 : f32 to vector<2x32xf32>
    %360 = arith.addf %359, %358 : vector<2x32xf32>
    %361 = arith.divf %359, %360 : vector<2x32xf32>
    %362 = vector.extract_strided_slice %355 {offsets = [0, 32], sizes = [2, 32], strides = [1, 1]} : vector<2x128xf32> to vector<2x32xf32>
    %363 = arith.negf %362 : vector<2x32xf32>
    %364 = math.exp %363 : vector<2x32xf32>
    %cst_63 = arith.constant 1.000000e+00 : f32
    %365 = vector.broadcast %cst_63 : f32 to vector<2x32xf32>
    %366 = arith.addf %365, %364 : vector<2x32xf32>
    %367 = arith.divf %365, %366 : vector<2x32xf32>
    %368 = vector.extract_strided_slice %355 {offsets = [0, 64], sizes = [2, 32], strides = [1, 1]} : vector<2x128xf32> to vector<2x32xf32>
    %369 = math.tanh %368 : vector<2x32xf32>
    %370 = vector.extract_strided_slice %355 {offsets = [0, 96], sizes = [2, 32], strides = [1, 1]} : vector<2x128xf32> to vector<2x32xf32>
    %371 = arith.negf %370 : vector<2x32xf32>
    %372 = math.exp %371 : vector<2x32xf32>
    %cst_64 = arith.constant 1.000000e+00 : f32
    %373 = vector.broadcast %cst_64 : f32 to vector<2x32xf32>
    %374 = arith.addf %373, %372 : vector<2x32xf32>
    %375 = arith.divf %373, %374 : vector<2x32xf32>
    %376 = arith.mulf %367, %343 : vector<2x32xf32>
    %377 = arith.mulf %361, %369 : vector<2x32xf32>
    %378 = arith.addf %376, %377 : vector<2x32xf32>
    %379 = math.tanh %378 : vector<2x32xf32>
    %380 = arith.mulf %375, %379 : vector<2x32xf32>
    %c6_i32_65 = arith.constant 6 : i32
    %381 = vector.broadcast %c6_i32_65 : i32 to vector<2x1xi32>
    %382 = arith.cmpi sgt, %1, %381 : vector<2x1xi32>
    %383 = arith.extui %382 : vector<2x1xi1> to vector<2x1xi32>
    %384 = arith.sitofp %383 : vector<2x1xi32> to vector<2x1xf32>
    %c1_i32_66 = arith.constant 1 : i32
    %385 = vector.broadcast %c1_i32_66 : i32 to vector<2x1xi32>
    %386 = arith.cmpi sgt, %1, %385 : vector<2x1xi32>
    %387 = arith.extui %386 : vector<2x1xi1> to vector<2x1xi32>
    %388 = arith.sitofp %387 : vector<2x1xi32> to vector<2x1xf32>
    %389 = vector.shape_cast %384 : vector<2x1xf32> to vector<2x1xf32>
    %390 = vector.broadcast %389 : vector<2x1xf32> to vector<2x16xf32>
    %391 = vector.shape_cast %388 : vector<2x1xf32> to vector<2x1xf32>
    %392 = vector.broadcast %391 : vector<2x1xf32> to vector<2x16xf32>
    %393 = tpu.concatenate %390, %392 in 1 : vector<2x16xf32>, vector<2x16xf32> -> vector<2x32xf32>
    %394 = arith.mulf %393, %378 : vector<2x32xf32>
    %cst_67 = arith.constant 1.000000e+00 : f32
    %395 = vector.broadcast %cst_67 : f32 to vector<2x32xf32>
    %396 = arith.subf %395, %393 : vector<2x32xf32>
    %397 = arith.mulf %396, %343 : vector<2x32xf32>
    %398 = arith.addf %394, %397 : vector<2x32xf32>
    %399 = arith.mulf %393, %380 : vector<2x32xf32>
    %cst_68 = arith.constant 1.000000e+00 : f32
    %400 = vector.broadcast %cst_68 : f32 to vector<2x32xf32>
    %401 = arith.subf %400, %393 : vector<2x32xf32>
    %402 = arith.mulf %401, %348 : vector<2x32xf32>
    %403 = arith.addf %399, %402 : vector<2x32xf32>
    %404 = arith.mulf %393, %380 : vector<2x32xf32>
    %405 = arith.addf %350, %404 : vector<2x32xf32>
    %406 = vector.extract_strided_slice %14 {offsets = [14, 0], sizes = [2, 128], strides = [1, 1]} : vector<16x128xf32> to vector<2x128xf32>
    %407 = vector.extract_strided_slice %16 {offsets = [0, 0], sizes = [2, 128], strides = [1, 1]} : vector<16x128xf32> to vector<2x128xf32>
    %408 = arith.addf %406, %407 : vector<2x128xf32>
    %cst_69 = arith.constant dense<0.000000e+00> : vector<2x128xf32>
    %409 = tpu.matmul %403, %17, %cst_69 {dimension_numbers = #tpu.dot_dimension_numbers<[1], [0], [0], [1], [0, 0, 1, 1], [], []>} : vector<2x32xf32>, vector<32x128xf32>, vector<2x128xf32> -> vector<2x128xf32>
    %410 = arith.addf %408, %409 : vector<2x128xf32>
    %411 = vector.extract_strided_slice %410 {offsets = [0, 0], sizes = [2, 32], strides = [1, 1]} : vector<2x128xf32> to vector<2x32xf32>
    %412 = arith.negf %411 : vector<2x32xf32>
    %413 = math.exp %412 : vector<2x32xf32>
    %cst_70 = arith.constant 1.000000e+00 : f32
    %414 = vector.broadcast %cst_70 : f32 to vector<2x32xf32>
    %415 = arith.addf %414, %413 : vector<2x32xf32>
    %416 = arith.divf %414, %415 : vector<2x32xf32>
    %417 = vector.extract_strided_slice %410 {offsets = [0, 32], sizes = [2, 32], strides = [1, 1]} : vector<2x128xf32> to vector<2x32xf32>
    %418 = arith.negf %417 : vector<2x32xf32>
    %419 = math.exp %418 : vector<2x32xf32>
    %cst_71 = arith.constant 1.000000e+00 : f32
    %420 = vector.broadcast %cst_71 : f32 to vector<2x32xf32>
    %421 = arith.addf %420, %419 : vector<2x32xf32>
    %422 = arith.divf %420, %421 : vector<2x32xf32>
    %423 = vector.extract_strided_slice %410 {offsets = [0, 64], sizes = [2, 32], strides = [1, 1]} : vector<2x128xf32> to vector<2x32xf32>
    %424 = math.tanh %423 : vector<2x32xf32>
    %425 = vector.extract_strided_slice %410 {offsets = [0, 96], sizes = [2, 32], strides = [1, 1]} : vector<2x128xf32> to vector<2x32xf32>
    %426 = arith.negf %425 : vector<2x32xf32>
    %427 = math.exp %426 : vector<2x32xf32>
    %cst_72 = arith.constant 1.000000e+00 : f32
    %428 = vector.broadcast %cst_72 : f32 to vector<2x32xf32>
    %429 = arith.addf %428, %427 : vector<2x32xf32>
    %430 = arith.divf %428, %429 : vector<2x32xf32>
    %431 = arith.mulf %422, %398 : vector<2x32xf32>
    %432 = arith.mulf %416, %424 : vector<2x32xf32>
    %433 = arith.addf %431, %432 : vector<2x32xf32>
    %434 = math.tanh %433 : vector<2x32xf32>
    %435 = arith.mulf %430, %434 : vector<2x32xf32>
    %c7_i32_73 = arith.constant 7 : i32
    %436 = vector.broadcast %c7_i32_73 : i32 to vector<2x1xi32>
    %437 = arith.cmpi sgt, %1, %436 : vector<2x1xi32>
    %438 = arith.extui %437 : vector<2x1xi1> to vector<2x1xi32>
    %439 = arith.sitofp %438 : vector<2x1xi32> to vector<2x1xf32>
    %c0_i32_74 = arith.constant 0 : i32
    %440 = vector.broadcast %c0_i32_74 : i32 to vector<2x1xi32>
    %441 = arith.cmpi sgt, %1, %440 : vector<2x1xi32>
    %442 = arith.extui %441 : vector<2x1xi1> to vector<2x1xi32>
    %443 = arith.sitofp %442 : vector<2x1xi32> to vector<2x1xf32>
    %444 = vector.shape_cast %439 : vector<2x1xf32> to vector<2x1xf32>
    %445 = vector.broadcast %444 : vector<2x1xf32> to vector<2x16xf32>
    %446 = vector.shape_cast %443 : vector<2x1xf32> to vector<2x1xf32>
    %447 = vector.broadcast %446 : vector<2x1xf32> to vector<2x16xf32>
    %448 = tpu.concatenate %445, %447 in 1 : vector<2x16xf32>, vector<2x16xf32> -> vector<2x32xf32>
    %449 = arith.mulf %448, %435 : vector<2x32xf32>
    %450 = arith.addf %405, %449 : vector<2x32xf32>
    %451 = vector.broadcast %2 : vector<2x1xf32> to vector<2x32xf32>
    %452 = arith.divf %450, %451 : vector<2x32xf32>
    %c0_75 = arith.constant 0 : index
    %c0_76 = arith.constant 0 : index
    %453 = vector.load %arg8[%c0_75, %c0_76] : memref<32x16xf32, #tpu.memory_space<vmem>>, vector<32x16xf32>
    %cst_77 = arith.constant dense<0.000000e+00> : vector<2x16xf32>
    %454 = tpu.matmul %452, %453, %cst_77 {dimension_numbers = #tpu.dot_dimension_numbers<[1], [0], [0], [1], [0, 0, 1, 1], [], []>} : vector<2x32xf32>, vector<32x16xf32>, vector<2x16xf32> -> vector<2x16xf32>
    %c0_78 = arith.constant 0 : index
    %c0_79 = arith.constant 0 : index
    %455 = vector.load %arg9[%c0_78, %c0_79] : memref<1x16xf32, #tpu.memory_space<vmem>>, vector<1x16xf32>
    %456 = vector.broadcast %455 : vector<1x16xf32> to vector<2x16xf32>
    %457 = arith.addf %454, %456 : vector<2x16xf32>
    %cst_80 = arith.constant 0.000000e+00 : f32
    %458 = vector.broadcast %cst_80 : f32 to vector<2x16xf32>
    %459 = arith.maximumf %457, %458 : vector<2x16xf32>
    %c0_81 = arith.constant 0 : index
    %c0_82 = arith.constant 0 : index
    %460 = vector.load %arg10[%c0_81, %c0_82] : memref<16x8xf32, #tpu.memory_space<vmem>>, vector<16x8xf32>
    %cst_83 = arith.constant dense<0.000000e+00> : vector<2x8xf32>
    %461 = tpu.matmul %459, %460, %cst_83 {dimension_numbers = #tpu.dot_dimension_numbers<[1], [0], [0], [1], [0, 0, 1, 1], [], []>} : vector<2x16xf32>, vector<16x8xf32>, vector<2x8xf32> -> vector<2x8xf32>
    %c0_84 = arith.constant 0 : index
    %c0_85 = arith.constant 0 : index
    %462 = vector.load %arg11[%c0_84, %c0_85] : memref<1x8xf32, #tpu.memory_space<vmem>>, vector<1x8xf32>
    %463 = vector.broadcast %462 : vector<1x8xf32> to vector<2x8xf32>
    %464 = arith.addf %461, %463 : vector<2x8xf32>
    %c0_86 = arith.constant 0 : index
    %c0_87 = arith.constant 0 : index
    %465 = vector.load %arg12[%c0_86, %c0_87] : memref<2x8xf32, #tpu.memory_space<vmem>>, vector<2x8xf32>
    tpu.vector_store %arg12[%c0_86, %c0_87], %464 {strides = array<i32>} : memref<2x8xf32, #tpu.memory_space<vmem>>, vector<2x8xf32>,
    return
  }
}

</mosaic_0001>

<llo_original>
// kernel: lstm_encoder_wo_norm.1
$region0: #{lstm_encoder_wo_norm.1}
  #allocation0 [shape = 'u32[]', space=smem, size = 0x4, offset = 0x4, fixed_abs, tag = 'smem constant byte address 0x4 - core index']
  #allocation1 [shape = 'u32[72,128]{1,0:T(1,128)}', space=vmem, size = 0x9000, scoped, tag = 'internal scratch']
  %s0 = inlined_call_operand.vmem [shape: f32[16,6], index: 0, kind: input, shape index: {}]
  %s1 = inlined_call_operand.vmem [shape: s32[2,1], index: 1, kind: input, shape index: {}]
  %s2 = inlined_call_operand.vmem [shape: f32[6,8], index: 2, kind: input, shape index: {}]
  %s3 = inlined_call_operand.vmem [shape: f32[1,8], index: 3, kind: input, shape index: {}]
  %s4 = inlined_call_operand.vmem [shape: f32[8,128], index: 4, kind: input, shape index: {}]
  %s5 = inlined_call_operand.vmem [shape: f32[8,128], index: 5, kind: input, shape index: {}]
  %s6 = inlined_call_operand.vmem [shape: f32[32,128], index: 6, kind: input, shape index: {}]
  %s7 = inlined_call_operand.vmem [shape: f32[1,128], index: 7, kind: input, shape index: {}]
  %s8 = inlined_call_operand.vmem [shape: f32[32,16], index: 8, kind: input, shape index: {}]
  %s9 = inlined_call_operand.vmem [shape: f32[1,16], index: 9, kind: input, shape index: {}]
  %s10 = inlined_call_operand.vmem [shape: f32[16,8], index: 10, kind: input, shape index: {}]
  %s11 = inlined_call_operand.vmem [shape: f32[1,8], index: 11, kind: input, shape index: {}]
  %s12 = inlined_call_operand.hbm [shape: f32[2,8], index: 12, kind: output, shape index: {}]
  %s13 = sld [smem:[#allocation0]]
  $region58: #{lstm_encoder_wo_norm.1} parent=0
    _
  %s15 = ssub.s32 1, %s13
  %s16 = scalar_select 0, %s15, %s13
  $region1: #{lstm_encoder_wo_norm.1} parent=0
    #allocation2 [shape = 'u8[1024]{0}', space=vmem, size = 0x400, scoped, tag = 'output window, operand 0, single buffered']
    #allocation3 [shape = 's32[1]{0}', space=sflag, size = 0x4, scoped, tag = 'scoped memory for lstm_encoder_wo_norm.1']
    %17 = vsyncpa [#allocation3], 0
    // Predicated region
    $region2: #{lstm_encoder_wo_norm.1} parent=1 // pred_check
      _
    $region3: #{lstm_encoder_wo_norm.1} parent=1 // pred_check_branch
      %19 = sbr.rel (0) target = $region5
    $region4: #{lstm_encoder_wo_norm.1} parent=1 // pred_region
      _
    $region5: #{lstm_encoder_wo_norm.1} parent=1 // pred_fallthru
      _
    // Predicated region
    $region6: #{lstm_encoder_wo_norm.1} parent=1 // pred_check
      _
    $region7: #{lstm_encoder_wo_norm.1} parent=1 // pred_check_branch
      %21 = sbr.rel (0) target = $region9
    $region8: #{lstm_encoder_wo_norm.1} parent=1 // pred_region
      _
    $region9: #{lstm_encoder_wo_norm.1} parent=1 // pred_fallthru
      _
    // Predicated region
    $region10: #{lstm_encoder_wo_norm.1} parent=1 // pred_check
      _
    $region11: #{lstm_encoder_wo_norm.1} parent=1 // pred_check_branch
      %23 = sbr.rel (0) target = $region13
    $region12: #{lstm_encoder_wo_norm.1} parent=1 // pred_region
      _
    $region13: #{lstm_encoder_wo_norm.1} parent=1 // pred_fallthru
      _
    // Predicated region
    $region14: #{lstm_encoder_wo_norm.1} parent=1 // pred_check
      _
    $region15: #{lstm_encoder_wo_norm.1} parent=1 // pred_check_branch
      %25 = sbr.rel (0) target = $region17
    $region16: #{lstm_encoder_wo_norm.1} parent=1 // pred_region
      _
    $region17: #{lstm_encoder_wo_norm.1} parent=1 // pred_fallthru
      _
    // Predicated region
    $region18: #{lstm_encoder_wo_norm.1} parent=1 // pred_check
      _
    $region19: #{lstm_encoder_wo_norm.1} parent=1 // pred_check_branch
      %27 = sbr.rel (0) target = $region21
    $region20: #{lstm_encoder_wo_norm.1} parent=1 // pred_region
      _
    $region21: #{lstm_encoder_wo_norm.1} parent=1 // pred_fallthru
      _
    // Predicated region
    $region22: #{lstm_encoder_wo_norm.1} parent=1 // pred_check
      _
    $region23: #{lstm_encoder_wo_norm.1} parent=1 // pred_check_branch
      %29 = sbr.rel (0) target = $region25
    $region24: #{lstm_encoder_wo_norm.1} parent=1 // pred_region
      _
    $region25: #{lstm_encoder_wo_norm.1} parent=1 // pred_fallthru
      _
    // Predicated region
    $region26: #{lstm_encoder_wo_norm.1} parent=1 // pred_check
      _
    $region27: #{lstm_encoder_wo_norm.1} parent=1 // pred_check_branch
      %31 = sbr.rel (0) target = $region29
    $region28: #{lstm_encoder_wo_norm.1} parent=1 // pred_region
      _
    $region29: #{lstm_encoder_wo_norm.1} parent=1 // pred_fallthru
      _
    // Predicated region
    $region30: #{lstm_encoder_wo_norm.1} parent=1 // pred_check
      _
    $region31: #{lstm_encoder_wo_norm.1} parent=1 // pred_check_branch
      %33 = sbr.rel (0) target = $region33
    $region32: #{lstm_encoder_wo_norm.1} parent=1 // pred_region
      _
    $region33: #{lstm_encoder_wo_norm.1} parent=1 // pred_fallthru
      _
    // Predicated region
    $region34: #{lstm_encoder_wo_norm.1} parent=1 // pred_check
      _
    $region35: #{lstm_encoder_wo_norm.1} parent=1 // pred_check_branch
      %35 = sbr.rel (0) target = $region37
    $region36: #{lstm_encoder_wo_norm.1} parent=1 // pred_region
      _
    $region37: #{lstm_encoder_wo_norm.1} parent=1 // pred_fallthru
      _
    // Predicated region
    $region38: #{lstm_encoder_wo_norm.1} parent=1 // pred_check
      _
    $region39: #{lstm_encoder_wo_norm.1} parent=1 // pred_check_branch
      %37 = sbr.rel (0) target = $region41
    $region40: #{lstm_encoder_wo_norm.1} parent=1 // pred_region
      _
    $region41: #{lstm_encoder_wo_norm.1} parent=1 // pred_fallthru
      _
    // Predicated region
    $region42: #{lstm_encoder_wo_norm.1} parent=1 // pred_check
      _
    $region43: #{lstm_encoder_wo_norm.1} parent=1 // pred_check_branch
      %39 = sbr.rel (0) target = $region45
    $region44: #{lstm_encoder_wo_norm.1} parent=1 // pred_region
      _
    $region45: #{lstm_encoder_wo_norm.1} parent=1 // pred_fallthru
      _
    // Predicated region
    $region46: #{lstm_encoder_wo_norm.1} parent=1 // pred_check
      _
    $region47: #{lstm_encoder_wo_norm.1} parent=1 // pred_check_branch
      %41 = sbr.rel (0) target = $region49
    $region48: #{lstm_encoder_wo_norm.1} parent=1 // pred_region
      _
    $region49: #{lstm_encoder_wo_norm.1} parent=1 // pred_fallthru
      _
    %v42 = vld [vmem:[%s0] sm:$0xff]
    %v43 = vld [vmem:[%s0 + $0x8] sm:$0xff]
    %v44 = vld [vmem:[%s1] sm:$0x3]
    %v45 = vcvt.s32.f32 %v44
    %v46 = vld [vmem:[%s2] sm:$0x3f]
    %v47 = vld [vmem:[%s3] sm:$0x1]
    %v49 = vperm.slane %v47, 0
    %vm51 = vcmask 48128
    %v53 = vsel %vm51, %v42, 0
    %v56 = vsel %vm51, %v43, 0
    %vm58 = vcmask 1045504
    %v60 = vsel %vm58, %v46, 0
    %62 = vmatpush.msra.mxu0 0.0
    %63 = vmatpush.msra.mxu0 0.0
    %64 = vmatpush.msra.mxu0 0.0
    %65 = vmatpush.msra.mxu0 0.0
    %66 = vmatpush.msra.mxu0 0.0
    %67 = vmatpush.msra.mxu0 0.0
    %68 = vmatpush.msra.mxu0 0.0
    %69 = vmatpush.msra.mxu0 0.0
    %70 = vmatpush.msra.mxu0 0.0
    %71 = vmatpush.msra.mxu0 0.0
    %72 = vmatpush.msra.mxu0 0.0
    %73 = vmatpush.msra.mxu0 0.0
    %74 = vmatpush.msra.mxu0 0.0
    %75 = vmatpush.msra.mxu0 0.0
    %76 = vmatpush.msra.mxu0 0.0
    %77 = vmatpush.msra.mxu0 %v60
    %78 = vmatmul.f32.gmra.mxu0 %v53
    %v79 = vpop.f32.mrf.mxu0
    %v80 = vadd.f32 %v49, %v79
    %81 = vmatmul.f32.gmra.mxu0 %v56
    %v82 = vpop.f32.mrf.mxu0
    %v83 = vadd.f32 %v49, %v82
    %84 = vdwg.mxu0
    %v85 = vmax.f32 %v80, 0.0
    %v86 = vmax.f32 %v83, 0.0
    %v87 = vld [vmem:[%s4] sm:$0xff]
    %v88 = vld [vmem:[%s7] sm:$0x1]
    %v90 = vperm.slane %v88, 0
    %vm92 = vcmask 64512
    %v94 = vsel %vm92, %v85, 0
    %v97 = vsel %vm92, %v86, 0
    %99 = vmatpush.msra.mxu0 0.0
    %100 = vmatpush.msra.mxu0 0.0
    %101 = vmatpush.msra.mxu0 0.0
    %102 = vmatpush.msra.mxu0 0.0
    %103 = vmatpush.msra.mxu0 0.0
    %104 = vmatpush.msra.mxu0 0.0
    %105 = vmatpush.msra.mxu0 0.0
    %106 = vmatpush.msra.mxu0 0.0
    %107 = vmatpush.msra.mxu0 0.0
    %108 = vmatpush.msra.mxu0 0.0
    %109 = vmatpush.msra.mxu0 0.0
    %110 = vmatpush.msra.mxu0 0.0
    %111 = vmatpush.msra.mxu0 0.0
    %112 = vmatpush.msra.mxu0 0.0
    %113 = vmatpush.msra.mxu0 0.0
    %114 = vmatpush.msra.mxu0 %v87
    %115 = vmatmul.f32.gmra.mxu0 %v94
    %v116 = vpop.f32.mrf.mxu0
    %v117 = vadd.f32 %v90, %v116
    %118 = vmatmul.f32.gmra.mxu0 %v97
    %v119 = vpop.f32.mrf.mxu0
    %v120 = vadd.f32 %v90, %v119
    %121 = vdwg.mxu0
    %v122 = vld [vmem:[%s5] sm:$0xff]
    %123 = vmatpush.msra.mxu0 0.0
    %124 = vmatpush.msra.mxu0 0.0
    %125 = vmatpush.msra.mxu0 0.0
    %126 = vmatpush.msra.mxu0 0.0
    %127 = vmatpush.msra.mxu0 0.0
    %128 = vmatpush.msra.mxu0 0.0
    %129 = vmatpush.msra.mxu0 0.0
    %130 = vmatpush.msra.mxu0 0.0
    %131 = vmatpush.msra.mxu0 0.0
    %132 = vmatpush.msra.mxu0 0.0
    %133 = vmatpush.msra.mxu0 0.0
    %134 = vmatpush.msra.mxu0 0.0
    %135 = vmatpush.msra.mxu0 0.0
    %136 = vmatpush.msra.mxu0 0.0
    %137 = vmatpush.msra.mxu0 0.0
    %138 = vmatpush.msra.mxu0 %v122
    %139 = vmatmul.f32.gmra.mxu0 %v94
    %v140 = vpop.f32.mrf.mxu0
    %v141 = vadd.f32 0.0, %v140
    %142 = vmatmul.f32.gmra.mxu0 %v97
    %v143 = vpop.f32.mrf.mxu0
    %v144 = vadd.f32 0.0, %v143
    %145 = vdwg.mxu0
    %v146 = vld [vmem:[%s6] sm:$0xff]
    %v147 = vld [vmem:[%s6 + $0x8] sm:$0xff]
    %v148 = vld [vmem:[%s6 + $0x10] sm:$0xff]
    %v149 = vld [vmem:[%s6 + $0x18] sm:$0xff]
    %v151 = vrot.slane %v144, 6
    %v153 = vadd.f32 %v117, %v151
    %vm154 = vcmask 261120
    %v156 = vsel %vm154, 0.0, 0
    %158 = vmatpush.msra.mxu0 0.0
    %159 = vmatpush.msra.mxu0 0.0
    %160 = vmatpush.msra.mxu0 0.0
    %161 = vmatpush.msra.mxu0 0.0
    %162 = vmatpush.msra.mxu0 0.0
    %163 = vmatpush.msra.mxu0 0.0
    %164 = vmatpush.msra.mxu0 0.0
    %165 = vmatpush.msra.mxu0 0.0
    %166 = vmatpush.msra.mxu0 0.0
    %167 = vmatpush.msra.mxu0 0.0
    %168 = vmatpush.msra.mxu0 0.0
    %169 = vmatpush.msra.mxu0 0.0
    %170 = vmatpush.msra.mxu0 %v149
    %171 = vmatpush.msra.mxu0 %v148
    %172 = vmatpush.msra.mxu0 %v147
    %173 = vmatpush.msra.mxu0 %v146
    %174 = vmatmul.f32.gmra.mxu0 %v156
    %v175 = vpop.f32.mrf.mxu0
    %v176 = vadd.f32 0.0, %v175
    %177 = vdwg.mxu0
    %v178 = vadd.f32 %v153, %v176
    %v179 = vxor.u32 %v178, 2147483648
    %v180 = vmul.f32 %v179, 1.442695
    %v181 = vpow.pop %v180
    %v182 = vadd.f32 %v181, 1.0
    %v183 = vrcp.pop %v182
    %v184 = vmul.f32 %v182, %v183
    %v185 = vsub.f32 1.0, %v184
    %v186 = vmul.f32 %v183, %v185
    %v187 = vadd.f32 %v183, %v186
    %vm188 = vweird.f32 %v182
    %vm189 = vweird.f32 %v183
    %vm190 = vmor %vm188, %vm189
    %v191 = vsel %vm190, %v183, %v187
    %v192 = vand.u32 2147483647, %v182
    %vm193 = vcmp.eq.f32.partialorder %v192, 8.507059e+37
    %v194 = vand.u32 %v182, 2147483648
    %v195 = vor.u32 1.1754944e-38, %v194
    %v196 = vsel %vm193, %v195, %v191
    %v197 = vmul.f32 1.0, %v196
    %v198 = vtanh.pop %v178
    %v199 = vmul.f32 %v197, 0.0
    %201 = vrot.lane.b32.xlu0 %v198, 64
    %v202 = vpop.permute.xlu0 %201
    %v204 = vmul.f32 %v197, %v202
    %206 = vrot.lane.b32.xlu0 %v204, 32
    %v207 = vpop.permute.xlu0 %206
    %v209 = vadd.f32 %v199, %v207
    %v210 = vtanh.pop %v209
    %212 = vrot.lane.b32.xlu0 %v210, 64
    %v213 = vpop.permute.xlu0 %212
    %v215 = vmul.f32 %v197, %v213
    %vm216 = vcmp.gt.s32.totalorder %v44, 0
    %v217 = vsel %vm216, 1, 0
    %v218 = vcvt.s32.f32 %v217
    %vm219 = vcmp.gt.s32.totalorder %v44, 7
    %v220 = vsel %vm219, 1, 0
    %v221 = vcvt.s32.f32 %v220
    %223 = vset.pattern.permute.xlu0 0
    %224 = vperm.xlu0 %223, %v218
    %v225 = vpop.permute.xlu0 %224
    %228 = vset.pattern.permute.xlu0 0
    %229 = vperm.xlu0 %228, %v221
    %v230 = vpop.permute.xlu0 %229
    %vm232 = vcmask 130048
    %v233 = vsel %vm232, %v225, %v230
    %235 = vrot.lane.b32.xlu0 %v209, 96
    %v236 = vpop.permute.xlu0 %235
    %v238 = vmul.f32 %v233, %v236
    %v239 = vsub.f32 1.0, %v233
    %v240 = vmul.f32 %v239, 0.0
    %v241 = vadd.f32 %v238, %v240
    %243 = vrot.lane.b32.xlu0 %v215, 32
    %v244 = vpop.permute.xlu0 %243
    %v246 = vmul.f32 %v233, %v244
    %v247 = vadd.f32 %v246, %v240
    %v248 = vadd.f32 %v246, 0.0
    %v249 = vrot.slane %v144, 2
    %v251 = vadd.f32 %v117, %v249
    %v253 = vsel %vm154, %v247, 0
    %255 = vmatpush.msra.mxu0 0.0
    %256 = vmatpush.msra.mxu0 0.0
    %257 = vmatpush.msra.mxu0 0.0
    %258 = vmatpush.msra.mxu0 0.0
    %259 = vmatpush.msra.mxu0 0.0
    %260 = vmatpush.msra.mxu0 0.0
    %261 = vmatpush.msra.mxu0 0.0
    %262 = vmatpush.msra.mxu0 0.0
    %263 = vmatpush.msra.mxu0 0.0
    %264 = vmatpush.msra.mxu0 0.0
    %265 = vmatpush.msra.mxu0 0.0
    %266 = vmatpush.msra.mxu0 0.0
    %267 = vmatpush.msra.mxu0 %v149
    %268 = vmatpush.msra.mxu0 %v148
    %269 = vmatpush.msra.mxu0 %v147
    %270 = vmatpush.msra.mxu0 %v146
    %271 = vmatmul.f32.gmra.mxu0 %v253
    %v272 = vpop.f32.mrf.mxu0
    %v273 = vadd.f32 0.0, %v272
    %274 = vdwg.mxu0
    %v276 = vrot.slane %v273, 6
    %v278 = vadd.f32 %v251, %v276
    %v279 = vxor.u32 %v278, 2147483648
    %v280 = vmul.f32 %v279, 1.442695
    %v281 = vpow.pop %v280
    %v282 = vadd.f32 %v281, 1.0
    %v283 = vrcp.pop %v282
    %v284 = vmul.f32 %v282, %v283
    %v285 = vsub.f32 1.0, %v284
    %v286 = vmul.f32 %v283, %v285
    %v287 = vadd.f32 %v283, %v286
    %vm288 = vweird.f32 %v282
    %vm289 = vweird.f32 %v283
    %vm290 = vmor %vm288, %vm289
    %v291 = vsel %vm290, %v283, %v287
    %v292 = vand.u32 2147483647, %v282
    %vm293 = vcmp.eq.f32.partialorder %v292, 8.507059e+37
    %v294 = vand.u32 %v282, 2147483648
    %v295 = vor.u32 1.1754944e-38, %v294
    %v296 = vsel %vm293, %v295, %v291
    %v297 = vmul.f32 1.0, %v296
    %v298 = vtanh.pop %v278
    %v300 = vrot.slane %v241, 6
    %301 = vrot.lane.b32.xlu0 %v300, 32
    %v302 = vpop.permute.xlu0 %301
    %v304 = vmul.f32 %v297, %v302
    %306 = vrot.lane.b32.xlu0 %v298, 64
    %v307 = vpop.permute.xlu0 %306
    %v309 = vmul.f32 %v297, %v307
    %311 = vrot.lane.b32.xlu0 %v309, 32
    %v312 = vpop.permute.xlu0 %311
    %v314 = vadd.f32 %v304, %v312
    %v315 = vtanh.pop %v314
    %317 = vrot.lane.b32.xlu0 %v315, 64
    %v318 = vpop.permute.xlu0 %317
    %v320 = vmul.f32 %v297, %v318
    %vm321 = vcmp.gt.s32.totalorder %v44, 1
    %v322 = vsel %vm321, 1, 0
    %v323 = vcvt.s32.f32 %v322
    %vm324 = vcmp.gt.s32.totalorder %v44, 6
    %v325 = vsel %vm324, 1, 0
    %v326 = vcvt.s32.f32 %v325
    %328 = vset.pattern.permute.xlu0 0
    %329 = vperm.xlu0 %328, %v323
    %v330 = vpop.permute.xlu0 %329
    %333 = vset.pattern.permute.xlu0 0
    %334 = vperm.xlu0 %333, %v326
    %v335 = vpop.permute.xlu0 %334
    %v337 = vsel %vm232, %v330, %v335
    %v339 = vrot.slane %v314, 2
    %340 = vrot.lane.b32.xlu0 %v339, 96
    %v341 = vpop.permute.xlu0 %340
    %v343 = vmul.f32 %v337, %v341
    %v344 = vsub.f32 1.0, %v337
    %v345 = vmul.f32 %v344, %v241
    %v346 = vadd.f32 %v343, %v345
    %v348 = vrot.slane %v320, 2
    %349 = vrot.lane.b32.xlu0 %v348, 32
    %v350 = vpop.permute.xlu0 %349
    %v352 = vmul.f32 %v337, %v350
    %v353 = vmul.f32 %v344, %v247
    %v354 = vadd.f32 %v352, %v353
    %v355 = vadd.f32 %v248, %v352
    %v357 = vsel %vm154, %v354, 0
    %359 = vmatpush.msra.mxu0 0.0
    %360 = vmatpush.msra.mxu0 0.0
    %361 = vmatpush.msra.mxu0 0.0
    %362 = vmatpush.msra.mxu0 0.0
    %363 = vmatpush.msra.mxu0 0.0
    %364 = vmatpush.msra.mxu0 0.0
    %365 = vmatpush.msra.mxu0 0.0
    %366 = vmatpush.msra.mxu0 0.0
    %367 = vmatpush.msra.mxu0 0.0
    %368 = vmatpush.msra.mxu0 0.0
    %369 = vmatpush.msra.mxu0 0.0
    %370 = vmatpush.msra.mxu0 0.0
    %371 = vmatpush.msra.mxu0 %v149
    %372 = vmatpush.msra.mxu0 %v148
    %373 = vmatpush.msra.mxu0 %v147
    %374 = vmatpush.msra.mxu0 %v146
    %375 = vmatmul.f32.gmra.mxu0 %v357
    %v376 = vpop.f32.mrf.mxu0
    %v377 = vadd.f32 0.0, %v376
    %378 = vdwg.mxu0
    %v380 = vrot.slane %v377, 4
    %v382 = vadd.f32 %v153, %v380
    %v383 = vxor.u32 %v382, 2147483648
    %v384 = vmul.f32 %v383, 1.442695
    %v385 = vpow.pop %v384
    %v386 = vadd.f32 %v385, 1.0
    %v387 = vrcp.pop %v386
    %v388 = vmul.f32 %v386, %v387
    %v389 = vsub.f32 1.0, %v388
    %v390 = vmul.f32 %v387, %v389
    %v391 = vadd.f32 %v387, %v390
    %vm392 = vweird.f32 %v386
    %vm393 = vweird.f32 %v387
    %vm394 = vmor %vm392, %vm393
    %v395 = vsel %vm394, %v387, %v391
    %v396 = vand.u32 2147483647, %v386
    %vm397 = vcmp.eq.f32.partialorder %v396, 8.507059e+37
    %v398 = vand.u32 %v386, 2147483648
    %v399 = vor.u32 1.1754944e-38, %v398
    %v400 = vsel %vm397, %v399, %v395
    %v401 = vmul.f32 1.0, %v400
    %v402 = vtanh.pop %v382
    %v404 = vrot.slane %v346, 4
    %405 = vrot.lane.b32.xlu0 %v404, 32
    %v406 = vpop.permute.xlu0 %405
    %v408 = vmul.f32 %v401, %v406
    %410 = vrot.lane.b32.xlu0 %v402, 64
    %v411 = vpop.permute.xlu0 %410
    %v413 = vmul.f32 %v401, %v411
    %415 = vrot.lane.b32.xlu0 %v413, 32
    %v416 = vpop.permute.xlu0 %415
    %v418 = vadd.f32 %v408, %v416
    %v419 = vtanh.pop %v418
    %421 = vrot.lane.b32.xlu0 %v419, 64
    %v422 = vpop.permute.xlu0 %421
    %v424 = vmul.f32 %v401, %v422
    %vm425 = vcmp.gt.s32.totalorder %v44, 2
    %v426 = vsel %vm425, 1, 0
    %v427 = vcvt.s32.f32 %v426
    %vm428 = vcmp.gt.s32.totalorder %v44, 5
    %v429 = vsel %vm428, 1, 0
    %v430 = vcvt.s32.f32 %v429
    %432 = vset.pattern.permute.xlu0 0
    %433 = vperm.xlu0 %432, %v427
    %v434 = vpop.permute.xlu0 %433
    %437 = vset.pattern.permute.xlu0 0
    %438 = vperm.xlu0 %437, %v430
    %v439 = vpop.permute.xlu0 %438
    %v441 = vsel %vm232, %v434, %v439
    %v443 = vrot.slane %v418, 4
    %444 = vrot.lane.b32.xlu0 %v443, 96
    %v445 = vpop.permute.xlu0 %444
    %v447 = vmul.f32 %v441, %v445
    %v448 = vsub.f32 1.0, %v441
    %v449 = vmul.f32 %v448, %v346
    %v450 = vadd.f32 %v447, %v449
    %v452 = vrot.slane %v424, 4
    %453 = vrot.lane.b32.xlu0 %v452, 32
    %v454 = vpop.permute.xlu0 %453
    %v456 = vmul.f32 %v441, %v454
    %v457 = vmul.f32 %v448, %v354
    %v458 = vadd.f32 %v456, %v457
    %v459 = vadd.f32 %v355, %v456
    %v461 = vsel %vm154, %v458, 0
    %463 = vmatpush.msra.mxu0 0.0
    %464 = vmatpush.msra.mxu0 0.0
    %465 = vmatpush.msra.mxu0 0.0
    %466 = vmatpush.msra.mxu0 0.0
    %467 = vmatpush.msra.mxu0 0.0
    %468 = vmatpush.msra.mxu0 0.0
    %469 = vmatpush.msra.mxu0 0.0
    %470 = vmatpush.msra.mxu0 0.0
    %471 = vmatpush.msra.mxu0 0.0
    %472 = vmatpush.msra.mxu0 0.0
    %473 = vmatpush.msra.mxu0 0.0
    %474 = vmatpush.msra.mxu0 0.0
    %475 = vmatpush.msra.mxu0 %v149
    %476 = vmatpush.msra.mxu0 %v148
    %477 = vmatpush.msra.mxu0 %v147
    %478 = vmatpush.msra.mxu0 %v146
    %479 = vmatmul.f32.gmra.mxu0 %v461
    %v480 = vpop.f32.mrf.mxu0
    %v481 = vadd.f32 0.0, %v480
    %482 = vdwg.mxu0
    %v484 = vrot.slane %v481, 2
    %v486 = vadd.f32 %v251, %v484
    %v487 = vxor.u32 %v486, 2147483648
    %v488 = vmul.f32 %v487, 1.442695
    %v489 = vpow.pop %v488
    %v490 = vadd.f32 %v489, 1.0
    %v491 = vrcp.pop %v490
    %v492 = vmul.f32 %v490, %v491
    %v493 = vsub.f32 1.0, %v492
    %v494 = vmul.f32 %v491, %v493
    %v495 = vadd.f32 %v491, %v494
    %vm496 = vweird.f32 %v490
    %vm497 = vweird.f32 %v491
    %vm498 = vmor %vm496, %vm497
    %v499 = vsel %vm498, %v491, %v495
    %v500 = vand.u32 2147483647, %v490
    %vm501 = vcmp.eq.f32.partialorder %v500, 8.507059e+37
    %v502 = vand.u32 %v490, 2147483648
    %v503 = vor.u32 1.1754944e-38, %v502
    %v504 = vsel %vm501, %v503, %v499
    %v505 = vmul.f32 1.0, %v504
    %v506 = vtanh.pop %v486
    %v508 = vrot.slane %v450, 2
    %509 = vrot.lane.b32.xlu0 %v508, 32
    %v510 = vpop.permute.xlu0 %509
    %v512 = vmul.f32 %v505, %v510
    %514 = vrot.lane.b32.xlu0 %v506, 64
    %v515 = vpop.permute.xlu0 %514
    %v517 = vmul.f32 %v505, %v515
    %519 = vrot.lane.b32.xlu0 %v517, 32
    %v520 = vpop.permute.xlu0 %519
    %v522 = vadd.f32 %v512, %v520
    %v523 = vtanh.pop %v522
    %525 = vrot.lane.b32.xlu0 %v523, 64
    %v526 = vpop.permute.xlu0 %525
    %v528 = vmul.f32 %v505, %v526
    %vm529 = vcmp.gt.s32.totalorder %v44, 3
    %v530 = vsel %vm529, 1, 0
    %v531 = vcvt.s32.f32 %v530
    %vm532 = vcmp.gt.s32.totalorder %v44, 4
    %v533 = vsel %vm532, 1, 0
    %v534 = vcvt.s32.f32 %v533
    %536 = vset.pattern.permute.xlu0 0
    %537 = vperm.xlu0 %536, %v531
    %v538 = vpop.permute.xlu0 %537
    %541 = vset.pattern.permute.xlu0 0
    %542 = vperm.xlu0 %541, %v534
    %v543 = vpop.permute.xlu0 %542
    %v545 = vsel %vm232, %v538, %v543
    %v547 = vrot.slane %v522, 6
    %548 = vrot.lane.b32.xlu0 %v547, 96
    %v549 = vpop.permute.xlu0 %548
    %v551 = vmul.f32 %v545, %v549
    %v552 = vsub.f32 1.0, %v545
    %v553 = vmul.f32 %v552, %v450
    %v554 = vadd.f32 %v551, %v553
    %v556 = vrot.slane %v528, 6
    %557 = vrot.lane.b32.xlu0 %v556, 32
    %v558 = vpop.permute.xlu0 %557
    %v560 = vmul.f32 %v545, %v558
    %v561 = vmul.f32 %v552, %v458
    %v562 = vadd.f32 %v560, %v561
    %v563 = vadd.f32 %v459, %v560
    %v565 = vrot.slane %v141, 6
    %v567 = vadd.f32 %v120, %v565
    %v569 = vsel %vm154, %v562, 0
    %571 = vmatpush.msra.mxu0 0.0
    %572 = vmatpush.msra.mxu0 0.0
    %573 = vmatpush.msra.mxu0 0.0
    %574 = vmatpush.msra.mxu0 0.0
    %575 = vmatpush.msra.mxu0 0.0
    %576 = vmatpush.msra.mxu0 0.0
    %577 = vmatpush.msra.mxu0 0.0
    %578 = vmatpush.msra.mxu0 0.0
    %579 = vmatpush.msra.mxu0 0.0
    %580 = vmatpush.msra.mxu0 0.0
    %581 = vmatpush.msra.mxu0 0.0
    %582 = vmatpush.msra.mxu0 0.0
    %583 = vmatpush.msra.mxu0 %v149
    %584 = vmatpush.msra.mxu0 %v148
    %585 = vmatpush.msra.mxu0 %v147
    %586 = vmatpush.msra.mxu0 %v146
    %587 = vmatmul.f32.gmra.mxu0 %v569
    %v588 = vpop.f32.mrf.mxu0
    %v589 = vadd.f32 0.0, %v588
    %590 = vdwg.mxu0
    %v591 = vadd.f32 %v567, %v589
    %v592 = vxor.u32 %v591, 2147483648
    %v593 = vmul.f32 %v592, 1.442695
    %v594 = vpow.pop %v593
    %v595 = vadd.f32 %v594, 1.0
    %v596 = vrcp.pop %v595
    %v597 = vmul.f32 %v595, %v596
    %v598 = vsub.f32 1.0, %v597
    %v599 = vmul.f32 %v596, %v598
    %v600 = vadd.f32 %v596, %v599
    %vm601 = vweird.f32 %v595
    %vm602 = vweird.f32 %v596
    %vm603 = vmor %vm601, %vm602
    %v604 = vsel %vm603, %v596, %v600
    %v605 = vand.u32 2147483647, %v595
    %vm606 = vcmp.eq.f32.partialorder %v605, 8.507059e+37
    %v607 = vand.u32 %v595, 2147483648
    %v608 = vor.u32 1.1754944e-38, %v607
    %v609 = vsel %vm606, %v608, %v604
    %v610 = vmul.f32 1.0, %v609
    %v611 = vtanh.pop %v591
    %613 = vrot.lane.b32.xlu0 %v554, 32
    %v614 = vpop.permute.xlu0 %613
    %v616 = vmul.f32 %v610, %v614
    %618 = vrot.lane.b32.xlu0 %v611, 64
    %v619 = vpop.permute.xlu0 %618
    %v621 = vmul.f32 %v610, %v619
    %623 = vrot.lane.b32.xlu0 %v621, 32
    %v624 = vpop.permute.xlu0 %623
    %v626 = vadd.f32 %v616, %v624
    %v627 = vtanh.pop %v626
    %629 = vrot.lane.b32.xlu0 %v627, 64
    %v630 = vpop.permute.xlu0 %629
    %v632 = vmul.f32 %v610, %v630
    %v633 = vsel %vm232, %v543, %v538
    %635 = vrot.lane.b32.xlu0 %v626, 96
    %v636 = vpop.permute.xlu0 %635
    %v638 = vmul.f32 %v633, %v636
    %v639 = vsub.f32 1.0, %v633
    %v640 = vmul.f32 %v639, %v554
    %v641 = vadd.f32 %v638, %v640
    %643 = vrot.lane.b32.xlu0 %v632, 32
    %v644 = vpop.permute.xlu0 %643
    %v646 = vmul.f32 %v633, %v644
    %v647 = vmul.f32 %v639, %v562
    %v648 = vadd.f32 %v646, %v647
    %v649 = vadd.f32 %v563, %v646
    %v650 = vrot.slane %v141, 2
    %v652 = vadd.f32 %v120, %v650
    %v654 = vsel %vm154, %v648, 0
    %656 = vmatpush.msra.mxu0 0.0
    %657 = vmatpush.msra.mxu0 0.0
    %658 = vmatpush.msra.mxu0 0.0
    %659 = vmatpush.msra.mxu0 0.0
    %660 = vmatpush.msra.mxu0 0.0
    %661 = vmatpush.msra.mxu0 0.0
    %662 = vmatpush.msra.mxu0 0.0
    %663 = vmatpush.msra.mxu0 0.0
    %664 = vmatpush.msra.mxu0 0.0
    %665 = vmatpush.msra.mxu0 0.0
    %666 = vmatpush.msra.mxu0 0.0
    %667 = vmatpush.msra.mxu0 0.0
    %668 = vmatpush.msra.mxu0 %v149
    %669 = vmatpush.msra.mxu0 %v148
    %670 = vmatpush.msra.mxu0 %v147
    %671 = vmatpush.msra.mxu0 %v146
    %672 = vmatmul.f32.gmra.mxu0 %v654
    %v673 = vpop.f32.mrf.mxu0
    %v674 = vadd.f32 0.0, %v673
    %675 = vdwg.mxu0
    %v677 = vrot.slane %v674, 6
    %v679 = vadd.f32 %v652, %v677
    %v680 = vxor.u32 %v679, 2147483648
    %v681 = vmul.f32 %v680, 1.442695
    %v682 = vpow.pop %v681
    %v683 = vadd.f32 %v682, 1.0
    %v684 = vrcp.pop %v683
    %v685 = vmul.f32 %v683, %v684
    %v686 = vsub.f32 1.0, %v685
    %v687 = vmul.f32 %v684, %v686
    %v688 = vadd.f32 %v684, %v687
    %vm689 = vweird.f32 %v683
    %vm690 = vweird.f32 %v684
    %vm691 = vmor %vm689, %vm690
    %v692 = vsel %vm691, %v684, %v688
    %v693 = vand.u32 2147483647, %v683
    %vm694 = vcmp.eq.f32.partialorder %v693, 8.507059e+37
    %v695 = vand.u32 %v683, 2147483648
    %v696 = vor.u32 1.1754944e-38, %v695
    %v697 = vsel %vm694, %v696, %v692
    %v698 = vmul.f32 1.0, %v697
    %v699 = vtanh.pop %v679
    %v701 = vrot.slane %v641, 6
    %702 = vrot.lane.b32.xlu0 %v701, 32
    %v703 = vpop.permute.xlu0 %702
    %v705 = vmul.f32 %v698, %v703
    %707 = vrot.lane.b32.xlu0 %v699, 64
    %v708 = vpop.permute.xlu0 %707
    %v710 = vmul.f32 %v698, %v708
    %712 = vrot.lane.b32.xlu0 %v710, 32
    %v713 = vpop.permute.xlu0 %712
    %v715 = vadd.f32 %v705, %v713
    %v716 = vtanh.pop %v715
    %718 = vrot.lane.b32.xlu0 %v716, 64
    %v719 = vpop.permute.xlu0 %718
    %v721 = vmul.f32 %v698, %v719
    %v722 = vsel %vm232, %v439, %v434
    %v724 = vrot.slane %v715, 2
    %725 = vrot.lane.b32.xlu0 %v724, 96
    %v726 = vpop.permute.xlu0 %725
    %v728 = vmul.f32 %v722, %v726
    %v729 = vsub.f32 1.0, %v722
    %v730 = vmul.f32 %v729, %v641
    %v731 = vadd.f32 %v728, %v730
    %v733 = vrot.slane %v721, 2
    %734 = vrot.lane.b32.xlu0 %v733, 32
    %v735 = vpop.permute.xlu0 %734
    %v737 = vmul.f32 %v722, %v735
    %v738 = vmul.f32 %v729, %v648
    %v739 = vadd.f32 %v737, %v738
    %v740 = vadd.f32 %v649, %v737
    %v742 = vsel %vm154, %v739, 0
    %744 = vmatpush.msra.mxu0 0.0
    %745 = vmatpush.msra.mxu0 0.0
    %746 = vmatpush.msra.mxu0 0.0
    %747 = vmatpush.msra.mxu0 0.0
    %748 = vmatpush.msra.mxu0 0.0
    %749 = vmatpush.msra.mxu0 0.0
    %750 = vmatpush.msra.mxu0 0.0
    %751 = vmatpush.msra.mxu0 0.0
    %752 = vmatpush.msra.mxu0 0.0
    %753 = vmatpush.msra.mxu0 0.0
    %754 = vmatpush.msra.mxu0 0.0
    %755 = vmatpush.msra.mxu0 0.0
    %756 = vmatpush.msra.mxu0 %v149
    %757 = vmatpush.msra.mxu0 %v148
    %758 = vmatpush.msra.mxu0 %v147
    %759 = vmatpush.msra.mxu0 %v146
    %760 = vmatmul.f32.gmra.mxu0 %v742
    %v761 = vpop.f32.mrf.mxu0
    %v762 = vadd.f32 0.0, %v761
    %763 = vdwg.mxu0
    %v765 = vrot.slane %v762, 4
    %v767 = vadd.f32 %v567, %v765
    %v768 = vxor.u32 %v767, 2147483648
    %v769 = vmul.f32 %v768, 1.442695
    %v770 = vpow.pop %v769
    %v771 = vadd.f32 %v770, 1.0
    %v772 = vrcp.pop %v771
    %v773 = vmul.f32 %v771, %v772
    %v774 = vsub.f32 1.0, %v773
    %v775 = vmul.f32 %v772, %v774
    %v776 = vadd.f32 %v772, %v775
    %vm777 = vweird.f32 %v771
    %vm778 = vweird.f32 %v772
    %vm779 = vmor %vm777, %vm778
    %v780 = vsel %vm779, %v772, %v776
    %v781 = vand.u32 2147483647, %v771
    %vm782 = vcmp.eq.f32.partialorder %v781, 8.507059e+37
    %v783 = vand.u32 %v771, 2147483648
    %v784 = vor.u32 1.1754944e-38, %v783
    %v785 = vsel %vm782, %v784, %v780
    %v786 = vmul.f32 1.0, %v785
    %v787 = vtanh.pop %v767
    %v789 = vrot.slane %v731, 4
    %790 = vrot.lane.b32.xlu0 %v789, 32
    %v791 = vpop.permute.xlu0 %790
    %v793 = vmul.f32 %v786, %v791
    %795 = vrot.lane.b32.xlu0 %v787, 64
    %v796 = vpop.permute.xlu0 %795
    %v798 = vmul.f32 %v786, %v796
    %800 = vrot.lane.b32.xlu0 %v798, 32
    %v801 = vpop.permute.xlu0 %800
    %v803 = vadd.f32 %v793, %v801
    %v804 = vtanh.pop %v803
    %806 = vrot.lane.b32.xlu0 %v804, 64
    %v807 = vpop.permute.xlu0 %806
    %v809 = vmul.f32 %v786, %v807
    %v810 = vsel %vm232, %v335, %v330
    %v812 = vrot.slane %v803, 4
    %813 = vrot.lane.b32.xlu0 %v812, 96
    %v814 = vpop.permute.xlu0 %813
    %v816 = vmul.f32 %v810, %v814
    %v817 = vsub.f32 1.0, %v810
    %v818 = vmul.f32 %v817, %v731
    %v819 = vadd.f32 %v816, %v818
    %v821 = vrot.slane %v809, 4
    %822 = vrot.lane.b32.xlu0 %v821, 32
    %v823 = vpop.permute.xlu0 %822
    %v825 = vmul.f32 %v810, %v823
    %v826 = vmul.f32 %v817, %v739
    %v827 = vadd.f32 %v825, %v826
    %v828 = vadd.f32 %v740, %v825
    %v830 = vsel %vm154, %v827, 0
    %832 = vmatpush.msra.mxu0 0.0
    %833 = vmatpush.msra.mxu0 0.0
    %834 = vmatpush.msra.mxu0 0.0
    %835 = vmatpush.msra.mxu0 0.0
    %836 = vmatpush.msra.mxu0 0.0
    %837 = vmatpush.msra.mxu0 0.0
    %838 = vmatpush.msra.mxu0 0.0
    %839 = vmatpush.msra.mxu0 0.0
    %840 = vmatpush.msra.mxu0 0.0
    %841 = vmatpush.msra.mxu0 0.0
    %842 = vmatpush.msra.mxu0 0.0
    %843 = vmatpush.msra.mxu0 0.0
    %844 = vmatpush.msra.mxu0 %v149
    %845 = vmatpush.msra.mxu0 %v148
    %846 = vmatpush.msra.mxu0 %v147
    %847 = vmatpush.msra.mxu0 %v146
    %848 = vmatmul.f32.gmra.mxu0 %v830
    %v849 = vpop.f32.mrf.mxu0
    %v850 = vadd.f32 0.0, %v849
    %851 = vdwg.mxu0
    %v853 = vrot.slane %v850, 2
    %v855 = vadd.f32 %v652, %v853
    %v856 = vxor.u32 %v855, 2147483648
    %v857 = vmul.f32 %v856, 1.442695
    %v858 = vpow.pop %v857
    %v859 = vadd.f32 %v858, 1.0
    %v860 = vrcp.pop %v859
    %v861 = vmul.f32 %v859, %v860
    %v862 = vsub.f32 1.0, %v861
    %v863 = vmul.f32 %v860, %v862
    %v864 = vadd.f32 %v860, %v863
    %vm865 = vweird.f32 %v859
    %vm866 = vweird.f32 %v860
    %vm867 = vmor %vm865, %vm866
    %v868 = vsel %vm867, %v860, %v864
    %v869 = vand.u32 2147483647, %v859
    %vm870 = vcmp.eq.f32.partialorder %v869, 8.507059e+37
    %v871 = vand.u32 %v859, 2147483648
    %v872 = vor.u32 1.1754944e-38, %v871
    %v873 = vsel %vm870, %v872, %v868
    %v874 = vmul.f32 1.0, %v873
    %v875 = vtanh.pop %v855
    %v877 = vrot.slane %v819, 2
    %878 = vrot.lane.b32.xlu0 %v877, 32
    %v879 = vpop.permute.xlu0 %878
    %v881 = vmul.f32 %v874, %v879
    %883 = vrot.lane.b32.xlu0 %v875, 64
    %v884 = vpop.permute.xlu0 %883
    %v886 = vmul.f32 %v874, %v884
    %888 = vrot.lane.b32.xlu0 %v886, 32
    %v889 = vpop.permute.xlu0 %888
    %v891 = vadd.f32 %v881, %v889
    %v892 = vtanh.pop %v891
    %894 = vrot.lane.b32.xlu0 %v892, 64
    %v895 = vpop.permute.xlu0 %894
    %v897 = vmul.f32 %v874, %v895
    %v898 = vsel %vm232, %v230, %v225
    %v900 = vrot.slane %v897, 6
    %901 = vrot.lane.b32.xlu0 %v900, 32
    %v902 = vpop.permute.xlu0 %901
    %v904 = vmul.f32 %v898, %v902
    %v905 = vadd.f32 %v828, %v904
    %907 = vset.pattern.permute.xlu0 0
    %908 = vperm.xlu0 %907, %v45
    %v909 = vpop.permute.xlu0 %908
    %v911 = vrcp.pop %v909
    %v912 = vmul.f32 %v909, %v911
    %v913 = vsub.f32 1.0, %v912
    %v914 = vmul.f32 %v911, %v913
    %v915 = vadd.f32 %v911, %v914
    %vm916 = vweird.f32 %v909
    %vm917 = vweird.f32 %v911
    %vm918 = vmor %vm916, %vm917
    %v919 = vsel %vm918, %v911, %v915
    %v920 = vand.u32 2147483647, %v909
    %vm921 = vcmp.eq.f32.partialorder %v920, 8.507059e+37
    %v922 = vand.u32 %v909, 2147483648
    %v923 = vor.u32 1.1754944e-38, %v922
    %v924 = vsel %vm921, %v923, %v919
    %v925 = vmul.f32 %v905, %v924
    %v926 = vld [vmem:[%s8] sm:$0xff]
    %v927 = vld [vmem:[%s8 + $0x8] sm:$0xff]
    %v928 = vld [vmem:[%s8 + $0x10] sm:$0xff]
    %v929 = vld [vmem:[%s8 + $0x18] sm:$0xff]
    %v930 = vld [vmem:[%s9] sm:$0x1]
    %v932 = vperm.slane %v930, 0
    %v935 = vsel %vm154, %v925, 0
    %937 = vmatpush.msra.mxu0 0.0
    %938 = vmatpush.msra.mxu0 0.0
    %939 = vmatpush.msra.mxu0 0.0
    %940 = vmatpush.msra.mxu0 0.0
    %941 = vmatpush.msra.mxu0 0.0
    %942 = vmatpush.msra.mxu0 0.0
    %943 = vmatpush.msra.mxu0 0.0
    %944 = vmatpush.msra.mxu0 0.0
    %945 = vmatpush.msra.mxu0 0.0
    %946 = vmatpush.msra.mxu0 0.0
    %947 = vmatpush.msra.mxu0 0.0
    %948 = vmatpush.msra.mxu0 0.0
    %949 = vmatpush.msra.mxu0 %v929
    %950 = vmatpush.msra.mxu0 %v928
    %951 = vmatpush.msra.mxu0 %v927
    %952 = vmatpush.msra.mxu0 %v926
    %953 = vmatmul.f32.gmra.mxu0 %v935
    %v954 = vpop.f32.mrf.mxu0
    %v955 = vadd.f32 %v932, %v954
    %956 = vdwg.mxu0
    %v957 = vmax.f32 %v955, 0.0
    %v958 = vld [vmem:[%s10] sm:$0xff]
    %v959 = vld [vmem:[%s10 + $0x8] sm:$0xff]
    %v960 = vld [vmem:[%s11] sm:$0x1]
    %v962 = vperm.slane %v960, 0
    %v965 = vsel %vm232, %v957, 0
    %967 = vmatpush.msra.mxu0 0.0
    %968 = vmatpush.msra.mxu0 0.0
    %969 = vmatpush.msra.mxu0 0.0
    %970 = vmatpush.msra.mxu0 0.0
    %971 = vmatpush.msra.mxu0 0.0
    %972 = vmatpush.msra.mxu0 0.0
    %973 = vmatpush.msra.mxu0 0.0
    %974 = vmatpush.msra.mxu0 0.0
    %975 = vmatpush.msra.mxu0 0.0
    %976 = vmatpush.msra.mxu0 0.0
    %977 = vmatpush.msra.mxu0 0.0
    %978 = vmatpush.msra.mxu0 0.0
    %979 = vmatpush.msra.mxu0 0.0
    %980 = vmatpush.msra.mxu0 0.0
    %981 = vmatpush.msra.mxu0 %v959
    %982 = vmatpush.msra.mxu0 %v958
    %983 = vmatmul.f32.gmra.mxu0 %v965
    %v984 = vpop.f32.mrf.mxu0
    %v985 = vadd.f32 %v962, %v984
    %986 = vdwg.mxu0
    %vm987 = vcmask 58368
    %988 = vst.msk [vmem:[#allocation2] sm:$0x3] %vm987, %v985
    // Predicated region
    $region50: #{lstm_encoder_wo_norm.1} parent=1 // pred_check
      _
    $region51: #{lstm_encoder_wo_norm.1} parent=1 // pred_check_branch
      %990 = sbr.rel (0) target = $region53
    $region52: #{lstm_encoder_wo_norm.1} parent=1 // pred_region
      %992 = vsyncadd [#allocation3], 0
      %s994 = sshll.u32 [#allocation2], 4
      %s995 = int_to_ptr.vmem [resolvable:$true] %s994
      %s996 = sshll.u32 %s12, 4
      %s997 = int_to_ptr.hbm [resolvable:$true] %s996
      %999 = dma.vmem_to_hbm [thread:$0]  %s995, 32, %s997, [#allocation3]
    $region53: #{lstm_encoder_wo_norm.1} parent=1 // pred_fallthru
      _
    // Predicated region
    $region54: #{lstm_encoder_wo_norm.1} parent=1 // pred_check
      _
    $region55: #{lstm_encoder_wo_norm.1} parent=1 // pred_check_branch
      %1001 = sbr.rel (0) target = $region57
    $region56: #{lstm_encoder_wo_norm.1} parent=1 // pred_region
      %1003 = dma.done [#allocation3], 32
    $region57: #{lstm_encoder_wo_norm.1} parent=1 // pred_fallthru
      _
    %1004 = vsyncpa [#allocation3], 1

</llo_original>
